<compile_context>
chip_gen: v6e
topology: v6e:2x2x1
jax: 0.10.0
libtpu: 0.0.40
codegen_flags: <defaults>
</compile_context>

<pallas_src>
import numpy as np

import jax
import jax.numpy as jnp
from jax.experimental import pallas as pl
from jax.experimental.pallas import tpu as pltpu


# ---------------------------------------------------------------------------
# Fused kernel: upsample -> conv1+BN+ReLU -> conv2+BN+ReLU (all lane-dense flat)
# Grid: (batch, output-row tile). conv1 is computed with a 1-row halo (T+2 rows)
# so conv2 never needs neighbor tiles; halo rows outside the image are masked to
# zero (they are conv2's vertical zero padding).
# ---------------------------------------------------------------------------
def fused_up_block_kernel(x_ref, mh_ref, mwk_ref, w1_ref, b1_ref, w2_ref, b2_ref,
                          o_ref):
    T = o_ref.shape[1]                 # output rows per tile
    wo_cout = o_ref.shape[2]

    x = x_ref[0]                       # (H, W*Cin) bf16
    mh = mh_ref[0]                     # (T+4, H)   bf16; zero rows = pad/halo outside image

    # ---- bilinear upsample (x2, align_corners=True), flat lane-dense layout ----
    # H interpolation: one (T+4, H) x (H, W*Cin) MXU matmul.
    t = jnp.dot(mh, x, preferred_element_type=jnp.float32)        # (T+4, W*Cin) f32
    # W interpolation: right matmul with kron(mw^T, I_Cin) -> no transposes.
    u = jnp.dot(t.astype(jnp.bfloat16), mwk_ref[...],
                preferred_element_type=jnp.float32)                # (T+4, Wo*Cin) f32
    u = u.astype(jnp.bfloat16)

    # ---- conv1 (BN scale folded) as 3 banded matmuls; width zero-pad baked in ----
    y1 = None
    for dh in range(3):
        p = jnp.dot(u[dh:dh + T + 2], w1_ref[dh],
                    preferred_element_type=jnp.float32)            # (T+2, Wo*Cmid)
        y1 = p if y1 is None else y1 + p
    y1 = jnp.maximum(y1 + b1_ref[...], 0.0)                        # bias + ReLU (lane-dense)

    # Halo rows outside the image act as conv2's vertical zero padding -> force zero.
    r0 = pl.program_id(1) * T
    total_rows = pl.num_programs(1) * T
    row_ids = r0 - 1 + jax.lax.broadcasted_iota(jnp.int32, (T + 2, 1), 0)
    y1 = jnp.where((row_ids >= 0) & (row_ids < total_rows), y1, 0.0)
    y1 = y1.astype(jnp.bfloat16)

    # ---- conv2 (BN scale folded) as 3 banded matmuls; width zero-pad baked in ----
    y2 = None
    for dh in range(3):
        p = jnp.dot(y1[dh:dh + T], w2_ref[dh],
                    preferred_element_type=jnp.float32)            # (T, Wo*Cout)
        y2 = p if y2 is None else y2 + p
    y2 = jnp.maximum(y2 + b2_ref[...], 0.0)

    o_ref[...] = y2.reshape(1, T, wo_cout).astype(o_ref.dtype)     # lane-dense bf16 store


# ---------------------------------------------------------------------------
# Wrapper helpers
# ---------------------------------------------------------------------------
def _interp_matrix(n_out, n_in):
    """Bilinear interpolation matrix, align_corners=True (PyTorch semantics)."""
    idx = jnp.arange(n_out)
    src = idx.astype(jnp.float32) * (n_in - 1) / max(n_out - 1, 1)
    lo = jnp.clip(jnp.floor(src).astype(jnp.int32), 0, n_in - 1)
    hi = jnp.clip(lo + 1, 0, n_in - 1)
    frac = src - lo.astype(jnp.float32)
    m = jnp.zeros((n_out, n_in), jnp.float32)
    m = m.at[idx, lo].add(1.0 - frac)
    m = m.at[idx, hi].add(frac)
    return m


def _build_mh_tiles(H, Ho, T):
    """Per-row-tile H-interp matrices with 2 zero halo/pad rows top and bottom."""
    mh = _interp_matrix(Ho, H)
    z = jnp.zeros((Ho + 4, H), jnp.float32).at[2:Ho + 2].set(mh)
    n_tiles = Ho // T
    tiles = jnp.stack([z[t * T:t * T + T + 4] for t in range(n_tiles)])
    return tiles.astype(jnp.bfloat16)                              # (n_tiles, T+4, H)


def _build_mw_kron(W, Wo, Cin):
    """Block-diagonal W-interp operator acting on the flattened (w*Cin) lane dim."""
    mw = _interp_matrix(Wo, W)                                     # (Wo, W)
    k = jnp.kron(mw.T, jnp.eye(Cin, dtype=jnp.float32))            # (W*Cin, Wo*Cin)
    return k.astype(jnp.bfloat16)


def _expand_conv_weight(w_hwio, width):
    """(3,3,Cin,Cout) HWIO conv weight -> (3, width*Cin, width*Cout) banded operands.

    Row (iw*Cin + ci), col (w*Cout + co) holds w[dh, dw, ci, co] with iw = w + dw - 1;
    out-of-range taps are simply absent, which bakes the 'same' width zero-padding in.
    """
    kh, kw, cin, cout = w_hwio.shape
    ow = np.arange(width)
    mats = []
    for dh in range(kh):
        m = jnp.zeros((width * cin, width * cout), jnp.float32)
        for dw in range(kw):
            iw = ow + dw - 1
            ok = (iw >= 0) & (iw < width)
            p = np.zeros((width, width), np.float32)
            p[iw[ok], ow[ok]] = 1.0
            m = m + jnp.kron(jnp.asarray(p), w_hwio[dh, dw])
        mats.append(m)
    return jnp.stack(mats).astype(jnp.bfloat16)


def _vmem_capacity_bytes():
    try:
        cap = getattr(pltpu.get_tpu_info(), "vmem_capacity_bytes", None)
        if cap:
            return int(cap)
    except Exception:
        pass
    return 64 * 1024 * 1024        # conservative default (v7x per-core VMEM)


def _pick_row_tile(N, H, W, Ho, Wo, cin, cmid, cout, budget_bytes):
    """Largest (8-aligned or full) output-row tile whose per-step footprint fits the
    budget, preferring >= 2 total parallel grid units (v7x has 2 TensorCores)."""
    const = 2 * (H * W * cin * 2                       # x block (bf16), double-buffered
                 + W * cin * Wo * cin * 2              # mw kron operator
                 + 3 * Wo * cin * Wo * cmid * 2        # conv1 banded weights
                 + 3 * Wo * cmid * Wo * cout * 2       # conv2 banded weights
                 + (Wo * cmid + Wo * cout) * 4)        # biases (f32)

    def est(T):
        return (const
                + 2 * ((T + 4) * H * 2 + T * Wo * cout * 2)         # mh tile + out block
                + (T + 4) * W * cin * 4 + (T + 4) * Wo * cin * 6    # t (f32), u (f32+bf16)
                + (T + 2) * Wo * cmid * 6 + T * Wo * cout * 4)      # y1 (f32+bf16), y2

    divisors = [d for d in range(1, Ho + 1) if Ho % d == 0]
    valid = [d for d in divisors if d % 8 == 0 or d == Ho]          # (8,128) block rule
    for need_multi in (True, False):
        cands = [d for d in valid
                 if est(d) <= budget_bytes
                 and (not need_multi or N * (Ho // d) >= 2)]
        if cands:
            return max(cands)
    print("WARNING: UNetUpBlock row tile does not fit the VMEM budget; "
          "falling back to T=%d (expect poor performance)." % min(valid))
    return min(valid)


# ---------------------------------------------------------------------------
# Wrapper
# ---------------------------------------------------------------------------
def unet_up_block_nhwc(x_nhwc, params, out_dtype=jnp.bfloat16):
    N, H, W, Cin = x_nhwc.shape
    Ho, Wo = 2 * H, 2 * W
    w1, b1, w2, b2 = params["w1"], params["b1"], params["w2"], params["b2"]
    Cmid, Cout = w1.shape[-1], w2.shape[-1]

    vmem_cap = _vmem_capacity_bytes()
    vmem_limit = int(vmem_cap * 3 // 4)                 # 96 MiB on v5e/v6e, 48 MiB on v7x
    T = _pick_row_tile(N, H, W, Ho, Wo, Cin, Cmid, Cout,
                       budget_bytes=int(vmem_limit * 0.85))
    n_tiles = Ho // T

    # Small constant operands (cheap; constant-folded per shape under jit).
    mh_tiles = _build_mh_tiles(H, Ho, T)                            # (n_tiles, T+4, H)
    mw_kron = _build_mw_kron(W, Wo, Cin)                            # (W*Cin, Wo*Cin)
    w1_big = _expand_conv_weight(w1, Wo)                            # (3, Wo*Cin, Wo*Cmid)
    w2_big = _expand_conv_weight(w2, Wo)                            # (3, Wo*Cmid, Wo*Cout)
    b1_f = jnp.tile(b1.astype(jnp.float32), (Wo,)).reshape(1, Wo * Cmid)
    b2_f = jnp.tile(b2.astype(jnp.float32), (Wo,)).reshape(1, Wo * Cout)

    x_flat = x_nhwc.astype(jnp.bfloat16).reshape(N, H, W * Cin)

    # Advisory cost estimate.
    per_tile_flops = 2 * ((T + 4) * H * (W * Cin)
                          + (T + 4) * (W * Cin) * (Wo * Cin)
                          + 3 * (T + 2) * (Wo * Cin) * (Wo * Cmid)
                          + 3 * T * (Wo * Cmid) * (Wo * Cout))
    bytes_accessed = int(N * n_tiles * H * W * Cin * 2
                         + N * Ho * Wo * Cout * 2
                         + (mh_tiles.size + mw_kron.size + w1_big.size + w2_big.size) * 2
                         + (b1_f.size + b2_f.size) * 4)
    cost = pl.CostEstimate(flops=int(N * n_tiles * per_tile_flops),
                           transcendentals=0, bytes_accessed=bytes_accessed)

    out = pl.pallas_call(
        fused_up_block_kernel,
        out_shape=jax.ShapeDtypeStruct((N, Ho, Wo * Cout), out_dtype),
        grid=(N, n_tiles),
        in_specs=[
            pl.BlockSpec((1, H, W * Cin), lambda n, t: (n, 0, 0)),
            pl.BlockSpec((1, T + 4, H), lambda n, t: (t, 0, 0)),
            pl.BlockSpec((W * Cin, Wo * Cin), lambda n, t: (0, 0)),
            pl.BlockSpec((3, Wo * Cin, Wo * Cmid), lambda n, t: (0, 0, 0)),
            pl.BlockSpec((1, Wo * Cmid), lambda n, t: (0, 0)),
            pl.BlockSpec((3, Wo * Cmid, Wo * Cout), lambda n, t: (0, 0, 0)),
            pl.BlockSpec((1, Wo * Cout), lambda n, t: (0, 0)),
        ],
        out_specs=pl.BlockSpec((1, T, Wo * Cout), lambda n, t: (n, t, 0)),
        compiler_params=pltpu.CompilerParams(
            dimension_semantics=("parallel", "parallel"),
            vmem_limit_bytes=vmem_limit),
        cost_estimate=cost,
    )(x_flat, mh_tiles, mw_kron, w1_big, b1_f, w2_big, b2_f)

    return out.reshape(N, Ho, Wo, Cout)


@jax.jit
def unet_up_block(x_nchw, params):
    # PyTorch NCHW -> NHWC kernel layout (boundary-only; see TODO at top).
    x = jnp.transpose(x_nchw, (0, 2, 3, 1))
    y = unet_up_block_nhwc(x, params)
    return jnp.transpose(y, (0, 3, 1, 2))


# ---------------------------------------------------------------------------
# Pure-JAX (f32) reference of the same forward pass, for a runtime sanity check.
# ---------------------------------------------------------------------------
def unet_up_block_reference(x_nchw, params):
    x = jnp.transpose(x_nchw, (0, 2, 3, 1)).astype(jnp.float32)
    N, H, W, Cin = x.shape
    Ho, Wo = 2 * H, 2 * W
    mh = _interp_matrix(Ho, H)
    mw = _interp_matrix(Wo, W)
    up = jnp.einsum("oh,nhwc->nowc", mh, x)
    up = jnp.einsum("pw,nowc->nopc", mw, up)

    def conv_bn_relu(z, w, b):
        y = jax.lax.conv_general_dilated(z, w, (1, 1), "SAME",
                                         dimension_numbers=("NHWC", "HWIO", "NHWC"))
        return jnp.maximum(y + b[None, None, None, :], 0.0)

    y = conv_bn_relu(up, params["w1"], params["b1"])
    y = conv_bn_relu(y, params["w2"], params["b2"])
    return jnp.transpose(y, (0, 3, 1, 2))


# ---------------------------------------------------------------------------
# Parameter init: conv weights (HWIO) with eval-mode BN scale folded in + bias.
# ---------------------------------------------------------------------------
def init_params(key, in_channels, out_channels, eps=1e-5):
    ks = jax.random.split(key, 10)

    def bn_fold(gamma, beta, mean, var):
        s = gamma / jnp.sqrt(var + eps)
        return s, beta - mean * s

    w1 = 0.1 * jax.random.normal(ks[0], (3, 3, in_channels, out_channels), jnp.float32)
    g1 = 1.0 + 0.1 * jax.random.normal(ks[1], (out_channels,), jnp.float32)
    be1 = 0.1 * jax.random.normal(ks[2], (out_channels,), jnp.float32)
    m1 = 0.05 * jax.random.normal(ks[3], (out_channels,), jnp.float32)
    v1 = 1.0 + 0.1 * jax.nn.softplus(jax.random.normal(ks[4], (out_channels,), jnp.float32))

    w2 = 0.1 * jax.random.normal(ks[5], (3, 3, out_channels, out_channels), jnp.float32)
    g2 = 1.0 + 0.1 * jax.random.normal(ks[6], (out_channels,), jnp.float32)
    be2 = 0.1 * jax.random.normal(ks[7], (out_channels,), jnp.float32)
    m2 = 0.05 * jax.random.normal(ks[8], (out_channels,), jnp.float32)
    v2 = 1.0 + 0.1 * jax.nn.softplus(jax.random.normal(ks[9], (out_channels,), jnp.float32))

    s1, bb1 = bn_fold(g1, be1, m1, v1)
    s2, bb2 = bn_fold(g2, be2, m2, v2)

    return {"w1": w1 * s1[None, None, None, :], "b1": bb1,
            "w2": w2 * s2[None, None, None, :], "b2": bb2}


if __name__ == "__main__":
    key = jax.random.PRNGKey(0)
    k_x, k_p = jax.random.split(key)

    N, Cin, H, W = 2, 4, 16, 16
    Cout = 8

    x = jax.random.normal(k_x, (N, Cin, H, W), jnp.float32)
    params = init_params(k_p, Cin, Cout)

    out = unet_up_block(x, params)
    jax.block_until_ready(out)

    assert out.shape == (N, Cout, 2 * H, 2 * W), out.shape
    assert bool(jnp.all(jnp.isfinite(out)))

    # Sanity check against the pure-JAX f32 reference (bf16 internals -> loose tol).
    ref = unet_up_block_reference(x, params)
    err = float(jnp.max(jnp.abs(out.astype(jnp.float32) - ref)))
    scale = float(jnp.max(jnp.abs(ref))) + 1e-6
    assert err / scale < 5e-2, (err, scale)

    print("KERNEL_OK")
</pallas_src>

<mosaic_0001>
module attributes {stable_mosaic.version = 11 : i64} {
  func.func private @main(%arg0: i32) attributes {dimension_semantics = [#tpu.dimension_semantics<core_parallel>], iteration_bounds = array<i64: 2>, tpu.core_type = #tpu.core_type<sc_scalar_subcore>, window_params = []} {
    return
  }
}

module attributes {stable_mosaic.version = 11 : i64} {
  func.func private @main(%arg0: i32) attributes {dimension_semantics = [#tpu.dimension_semantics<core_parallel>], iteration_bounds = array<i64: 2>, tpu.core_type = #tpu.core_type<sc_scalar_subcore>, window_params = []} {
    return
  }
}

module attributes {stable_mosaic.version = 11 : i64} {
  func.func @fused_up_block_kernel(%arg0: i32, %arg1: i32, %arg2: memref<1x16x64xbf16, #tpu.memory_space<vmem>>, %arg3: memref<1x36x16xbf16, #tpu.memory_space<vmem>>, %arg4: memref<64x128xbf16, #tpu.memory_space<vmem>>, %arg5: memref<3x128x256xbf16, #tpu.memory_space<vmem>>, %arg6: memref<1x256xf32, #tpu.memory_space<vmem>>, %arg7: memref<3x256x256xbf16, #tpu.memory_space<vmem>>, %arg8: memref<1x256xf32, #tpu.memory_space<vmem>>, %arg9: memref<1x32x256xbf16, #tpu.memory_space<vmem>>) attributes {dimension_semantics = [#tpu.dimension_semantics<parallel>, #tpu.dimension_semantics<parallel>], iteration_bounds = array<i64: 2, 1>, scalar_prefetch = 0 : i64, scratch_operands = 0 : i64, tpu.core_type = #tpu.core_type<tc>, window_params = [{transform_indices = @transform_0, window_bounds = array<i64: 1, 16, 64>}, {transform_indices = @transform_1, window_bounds = array<i64: 1, 36, 16>}, {pipeline_mode = #tpu.pipeline_mode<synchronous>, transform_indices = @transform_2, window_bounds = array<i64: 64, 128>}, {pipeline_mode = #tpu.pipeline_mode<synchronous>, transform_indices = @transform_3, window_bounds = array<i64: 3, 128, 256>}, {pipeline_mode = #tpu.pipeline_mode<synchronous>, transform_indices = @transform_4, window_bounds = array<i64: 1, 256>}, {pipeline_mode = #tpu.pipeline_mode<synchronous>, transform_indices = @transform_5, window_bounds = array<i64: 3, 256, 256>}, {pipeline_mode = #tpu.pipeline_mode<synchronous>, transform_indices = @transform_6, window_bounds = array<i64: 1, 256>}, {transform_indices = @transform_7, window_bounds = array<i64: 1, 32, 256>}]} {
    %c0 = arith.constant 0 : index
    %c0_0 = arith.constant 0 : index
    %c0_1 = arith.constant 0 : index
    %0 = vector.load %arg2[%c0, %c0_0, %c0_1] : memref<1x16x64xbf16, #tpu.memory_space<vmem>>, vector<1x16x64xbf16>
    %1 = vector.shape_cast %0 : vector<1x16x64xbf16> to vector<16x64xbf16>
    %c0_2 = arith.constant 0 : index
    %c0_3 = arith.constant 0 : index
    %c0_4 = arith.constant 0 : index
    %2 = vector.load %arg3[%c0_2, %c0_3, %c0_4] : memref<1x36x16xbf16, #tpu.memory_space<vmem>>, vector<1x36x16xbf16>
    %3 = vector.shape_cast %2 : vector<1x36x16xbf16> to vector<36x16xbf16>
    %cst = arith.constant dense<0.000000e+00> : vector<36x64xf32>
    %4 = tpu.matmul %3, %1, %cst {dimension_numbers = #tpu.dot_dimension_numbers<[1], [0], [0], [1], [0, 0, 1, 1], [], []>} : vector<36x16xbf16>, vector<16x64xbf16>, vector<36x64xf32> -> vector<36x64xf32>
    %5 = arith.truncf %4 : vector<36x64xf32> to vector<36x64xbf16>
    %c0_5 = arith.constant 0 : index
    %c0_6 = arith.constant 0 : index
    %6 = vector.load %arg4[%c0_5, %c0_6] : memref<64x128xbf16, #tpu.memory_space<vmem>>, vector<64x128xbf16>
    %cst_7 = arith.constant dense<0.000000e+00> : vector<36x128xf32>
    %7 = tpu.matmul %5, %6, %cst_7 {dimension_numbers = #tpu.dot_dimension_numbers<[1], [0], [0], [1], [0, 0, 1, 1], [], []>} : vector<36x64xbf16>, vector<64x128xbf16>, vector<36x128xf32> -> vector<36x128xf32>
    %8 = arith.truncf %7 : vector<36x128xf32> to vector<36x128xbf16>
    %9 = vector.extract_strided_slice %8 {offsets = [0, 0], sizes = [34, 128], strides = [1, 1]} : vector<36x128xbf16> to vector<34x128xbf16>
    %c0_8 = arith.constant 0 : index
    %c0_9 = arith.constant 0 : index
    %c0_10 = arith.constant 0 : index
    %10 = vector.load %arg5[%c0_8, %c0_9, %c0_10] : memref<3x128x256xbf16, #tpu.memory_space<vmem>>, vector<1x128x256xbf16>
    %11 = vector.shape_cast %10 : vector<1x128x256xbf16> to vector<128x256xbf16>
    %cst_11 = arith.constant dense<0.000000e+00> : vector<34x256xf32>
    %12 = tpu.matmul %9, %11, %cst_11 {dimension_numbers = #tpu.dot_dimension_numbers<[1], [0], [0], [1], [0, 0, 1, 1], [], []>} : vector<34x128xbf16>, vector<128x256xbf16>, vector<34x256xf32> -> vector<34x256xf32>
    %13 = vector.extract_strided_slice %8 {offsets = [1, 0], sizes = [34, 128], strides = [1, 1]} : vector<36x128xbf16> to vector<34x128xbf16>
    %c1 = arith.constant 1 : index
    %c0_12 = arith.constant 0 : index
    %c0_13 = arith.constant 0 : index
    %14 = vector.load %arg5[%c1, %c0_12, %c0_13] : memref<3x128x256xbf16, #tpu.memory_space<vmem>>, vector<1x128x256xbf16>
    %15 = vector.shape_cast %14 : vector<1x128x256xbf16> to vector<128x256xbf16>
    %cst_14 = arith.constant dense<0.000000e+00> : vector<34x256xf32>
    %16 = tpu.matmul %13, %15, %cst_14 {dimension_numbers = #tpu.dot_dimension_numbers<[1], [0], [0], [1], [0, 0, 1, 1], [], []>} : vector<34x128xbf16>, vector<128x256xbf16>, vector<34x256xf32> -> vector<34x256xf32>
    %17 = arith.addf %12, %16 : vector<34x256xf32>
    %18 = vector.extract_strided_slice %8 {offsets = [2, 0], sizes = [34, 128], strides = [1, 1]} : vector<36x128xbf16> to vector<34x128xbf16>
    %c2 = arith.constant 2 : index
    %c0_15 = arith.constant 0 : index
    %c0_16 = arith.constant 0 : index
    %19 = vector.load %arg5[%c2, %c0_15, %c0_16] : memref<3x128x256xbf16, #tpu.memory_space<vmem>>, vector<1x128x256xbf16>
    %20 = vector.shape_cast %19 : vector<1x128x256xbf16> to vector<128x256xbf16>
    %cst_17 = arith.constant dense<0.000000e+00> : vector<34x256xf32>
    %21 = tpu.matmul %18, %20, %cst_17 {dimension_numbers = #tpu.dot_dimension_numbers<[1], [0], [0], [1], [0, 0, 1, 1], [], []>} : vector<34x128xbf16>, vector<128x256xbf16>, vector<34x256xf32> -> vector<34x256xf32>
    %22 = arith.addf %17, %21 : vector<34x256xf32>
    %c0_18 = arith.constant 0 : index
    %c0_19 = arith.constant 0 : index
    %23 = vector.load %arg6[%c0_18, %c0_19] : memref<1x256xf32, #tpu.memory_space<vmem>>, vector<1x256xf32>
    %24 = vector.broadcast %23 : vector<1x256xf32> to vector<34x256xf32>
    %25 = arith.addf %22, %24 : vector<34x256xf32>
    %cst_20 = arith.constant 0.000000e+00 : f32
    %26 = vector.broadcast %cst_20 : f32 to vector<34x256xf32>
    %27 = arith.maximumf %25, %26 : vector<34x256xf32>
    %c32_i32 = arith.constant 32 : i32
    %28 = arith.muli %arg1, %c32_i32 : i32
    %c1_i32 = arith.constant 1 : i32
    %29 = arith.subi %28, %c1_i32 : i32
    %30 = tpu.iota {dimensions = array<i32: 0>} : vector<34x1xi32>
    %31 = vector.broadcast %29 : i32 to vector<34x1xi32>
    %32 = arith.addi %31, %30 : vector<34x1xi32>
    %c0_i32 = arith.constant 0 : i32
    %33 = vector.broadcast %c0_i32 : i32 to vector<34x1xi32>
    %34 = arith.cmpi sge, %32, %33 : vector<34x1xi32>
    %c32_i32_21 = arith.constant 32 : i32
    %35 = vector.broadcast %c32_i32_21 : i32 to vector<34x1xi32>
    %36 = arith.cmpi slt, %32, %35 : vector<34x1xi32>
    %37 = arith.andi %34, %36 : vector<34x1xi1>
    %cst_22 = arith.constant 0.000000e+00 : f32
    %38 = vector.shape_cast %37 : vector<34x1xi1> to vector<34x1xi1>
    %39 = vector.broadcast %38 : vector<34x1xi1> to vector<34x256xi1>
    %40 = vector.broadcast %cst_22 : f32 to vector<34x256xf32>
    %41 = arith.select %39, %27, %40 : vector<34x256xi1>, vector<34x256xf32>
    %42 = arith.truncf %41 : vector<34x256xf32> to vector<34x256xbf16>
    %43 = vector.extract_strided_slice %42 {offsets = [0, 0], sizes = [32, 256], strides = [1, 1]} : vector<34x256xbf16> to vector<32x256xbf16>
    %c0_23 = arith.constant 0 : index
    %c0_24 = arith.constant 0 : index
    %c0_25 = arith.constant 0 : index
    %44 = vector.load %arg7[%c0_23, %c0_24, %c0_25] : memref<3x256x256xbf16, #tpu.memory_space<vmem>>, vector<1x256x256xbf16>
    %45 = vector.shape_cast %44 : vector<1x256x256xbf16> to vector<256x256xbf16>
    %cst_26 = arith.constant dense<0.000000e+00> : vector<32x256xf32>
    %46 = tpu.matmul %43, %45, %cst_26 {dimension_numbers = #tpu.dot_dimension_numbers<[1], [0], [0], [1], [0, 0, 1, 1], [], []>} : vector<32x256xbf16>, vector<256x256xbf16>, vector<32x256xf32> -> vector<32x256xf32>
    %47 = vector.extract_strided_slice %42 {offsets = [1, 0], sizes = [32, 256], strides = [1, 1]} : vector<34x256xbf16> to vector<32x256xbf16>
    %c1_27 = arith.constant 1 : index
    %c0_28 = arith.constant 0 : index
    %c0_29 = arith.constant 0 : index
    %48 = vector.load %arg7[%c1_27, %c0_28, %c0_29] : memref<3x256x256xbf16, #tpu.memory_space<vmem>>, vector<1x256x256xbf16>
    %49 = vector.shape_cast %48 : vector<1x256x256xbf16> to vector<256x256xbf16>
    %cst_30 = arith.constant dense<0.000000e+00> : vector<32x256xf32>
    %50 = tpu.matmul %47, %49, %cst_30 {dimension_numbers = #tpu.dot_dimension_numbers<[1], [0], [0], [1], [0, 0, 1, 1], [], []>} : vector<32x256xbf16>, vector<256x256xbf16>, vector<32x256xf32> -> vector<32x256xf32>
    %51 = arith.addf %46, %50 : vector<32x256xf32>
    %52 = vector.extract_strided_slice %42 {offsets = [2, 0], sizes = [32, 256], strides = [1, 1]} : vector<34x256xbf16> to vector<32x256xbf16>
    %c2_31 = arith.constant 2 : index
    %c0_32 = arith.constant 0 : index
    %c0_33 = arith.constant 0 : index
    %53 = vector.load %arg7[%c2_31, %c0_32, %c0_33] : memref<3x256x256xbf16, #tpu.memory_space<vmem>>, vector<1x256x256xbf16>
    %54 = vector.shape_cast %53 : vector<1x256x256xbf16> to vector<256x256xbf16>
    %cst_34 = arith.constant dense<0.000000e+00> : vector<32x256xf32>
    %55 = tpu.matmul %52, %54, %cst_34 {dimension_numbers = #tpu.dot_dimension_numbers<[1], [0], [0], [1], [0, 0, 1, 1], [], []>} : vector<32x256xbf16>, vector<256x256xbf16>, vector<32x256xf32> -> vector<32x256xf32>
    %56 = arith.addf %51, %55 : vector<32x256xf32>
    %c0_35 = arith.constant 0 : index
    %c0_36 = arith.constant 0 : index
    %57 = vector.load %arg8[%c0_35, %c0_36] : memref<1x256xf32, #tpu.memory_space<vmem>>, vector<1x256xf32>
    %58 = vector.broadcast %57 : vector<1x256xf32> to vector<32x256xf32>
    %59 = arith.addf %56, %58 : vector<32x256xf32>
    %cst_37 = arith.constant 0.000000e+00 : f32
    %60 = vector.broadcast %cst_37 : f32 to vector<32x256xf32>
    %61 = arith.maximumf %59, %60 : vector<32x256xf32>
    %62 = vector.shape_cast %61 : vector<32x256xf32> to vector<1x32x256xf32>
    %63 = arith.truncf %62 : vector<1x32x256xf32> to vector<1x32x256xbf16>
    %c0_38 = arith.constant 0 : index
    %c0_39 = arith.constant 0 : index
    %c0_40 = arith.constant 0 : index
    %64 = vector.load %arg9[%c0_38, %c0_39, %c0_40] : memref<1x32x256xbf16, #tpu.memory_space<vmem>>, vector<1x32x256xbf16>
    tpu.vector_store %arg9[%c0_38, %c0_39, %c0_40], %63 {strides = array<i32>} : memref<1x32x256xbf16, #tpu.memory_space<vmem>>, vector<1x32x256xbf16>,
    return
  }
  func.func @transform_0(%arg0: i32, %arg1: i32) -> (i32, i32, i32) {
    %c0_i32 = arith.constant 0 : i32
    %c0_i32_0 = arith.constant 0 : i32
    %c0_i32_1 = arith.constant 0 : i32
    return %arg0, %c0_i32, %c0_i32_0 : i32, i32, i32
  }
  func.func @transform_1(%arg0: i32, %arg1: i32) -> (i32, i32, i32) {
    %c0_i32 = arith.constant 0 : i32
    %c0_i32_0 = arith.constant 0 : i32
    %c0_i32_1 = arith.constant 0 : i32
    return %arg1, %c0_i32, %c0_i32_0 : i32, i32, i32
  }
  func.func @transform_2(%arg0: i32, %arg1: i32) -> (i32, i32) {
    %c0_i32 = arith.constant 0 : i32
    %c0_i32_0 = arith.constant 0 : i32
    %c0_i32_1 = arith.constant 0 : i32
    return %c0_i32, %c0_i32_0 : i32, i32
  }
  func.func @transform_3(%arg0: i32, %arg1: i32) -> (i32, i32, i32) {
    %c0_i32 = arith.constant 0 : i32
    %c0_i32_0 = arith.constant 0 : i32
    %c0_i32_1 = arith.constant 0 : i32
    %c0_i32_2 = arith.constant 0 : i32
    return %c0_i32, %c0_i32_0, %c0_i32_1 : i32, i32, i32
  }
  func.func @transform_4(%arg0: i32, %arg1: i32) -> (i32, i32) {
    %c0_i32 = arith.constant 0 : i32
    %c0_i32_0 = arith.constant 0 : i32
    %c0_i32_1 = arith.constant 0 : i32
    return %c0_i32, %c0_i32_0 : i32, i32
  }
  func.func @transform_5(%arg0: i32, %arg1: i32) -> (i32, i32, i32) {
    %c0_i32 = arith.constant 0 : i32
    %c0_i32_0 = arith.constant 0 : i32
    %c0_i32_1 = arith.constant 0 : i32
    %c0_i32_2 = arith.constant 0 : i32
    return %c0_i32, %c0_i32_0, %c0_i32_1 : i32, i32, i32
  }
  func.func @transform_6(%arg0: i32, %arg1: i32) -> (i32, i32) {
    %c0_i32 = arith.constant 0 : i32
    %c0_i32_0 = arith.constant 0 : i32
    %c0_i32_1 = arith.constant 0 : i32
    return %c0_i32, %c0_i32_0 : i32, i32
  }
  func.func @transform_7(%arg0: i32, %arg1: i32) -> (i32, i32, i32) {
    %c0_i32 = arith.constant 0 : i32
    %c0_i32_0 = arith.constant 0 : i32
    return %arg0, %arg1, %c0_i32 : i32, i32, i32
  }
}

</mosaic_0001>

<llo_original>
// kernel: tile.13
$region0: #{tile.13}
  #allocation0 [shape = 's32[1]{0}', space=sflag, size = 0x4, scoped, tag = 'scoped memory for tile.13']
  %s0 = inlined_call_operand.vmem [shape: f32[8], index: 0, kind: input, shape index: {}]
  %s1 = inlined_call_operand.vmem [shape: f32[32,8], index: 1, kind: output, shape index: {}]
  // Predicated region
  $region2: #{tile.13} parent=0 // pred_check
    _
  $region3: #{tile.13} parent=0 // pred_check_branch
    %3 = sbr.rel (0) target = $region5
  $region4: #{tile.13} parent=0 // pred_region
    _
  $region5: #{tile.13} parent=0 // pred_fallthru
    _
  %v4 = vld [vmem:[%s0] ss:$0 sm:$0xff]
  %5 = vst [vmem:[%s1] sm:$0xff] %v4
  %s6 = scalar_lea.vmem %s1, 8
  %7 = vst [vmem:[%s6] sm:$0xff] %v4
  %s8 = scalar_lea.vmem %s1, 16
  %9 = vst [vmem:[%s8] sm:$0xff] %v4
  %s10 = scalar_lea.vmem %s1, 24
  %11 = vst [vmem:[%s10] sm:$0xff] %v4

// kernel: tile.14
$region0: #{tile.14}
  %s0 = inlined_call_operand.vmem [shape: f32[32,8], index: 0, kind: input, shape index: {}]
  %s1 = inlined_call_operand.vmem [shape: f32[1,256], index: 1, kind: output, shape index: {}]
  $region1: #{tile.14} parent=0
    #allocation0 [shape = 'u8[8192]{0}', space=vmem, size = 0x2000, scoped, tag = 'scoped mem for output reshape']
    %s2 = smov 3
    %v3 = vld [vmem:[%s0] ss:$16 sm:%s2]
    %vm4 = vcmask 64512
    %5 = vst.msk [vmem:[#allocation0] ss:$8 sm:$0x3] %vm4, %v3
    %s6 = scalar_lea.vmem %s0, 15
    %s7 = smov 3
    %v8 = vld [vmem:[%s6] ss:$16 sm:%s7]
    %9 = vrot.lane.b32.xlu0 %v8, 120
    %v10 = vpop.permute.xlu0 %9
    %vm11 = vcmask 1048512
    %12 = vst.msk [vmem:[#allocation0] ss:$8 sm:$0x3] %vm11, %v10
    %s13 = scalar_lea.vmem %s0, 14
    %s14 = smov 3
    %v15 = vld [vmem:[%s13] ss:$16 sm:%s14]
    %16 = vrot.lane.b32.xlu0 %v15, 112
    %v17 = vpop.permute.xlu0 %16
    %vm18 = vcmask 982912
    %19 = vst.msk [vmem:[#allocation0] ss:$8 sm:$0x3] %vm18, %v17
    %s20 = scalar_lea.vmem %s0, 13
    %s21 = smov 3
    %v22 = vld [vmem:[%s20] ss:$16 sm:%s21]
    %23 = vrot.lane.b32.xlu0 %v22, 104
    %v24 = vpop.permute.xlu0 %23
    %vm25 = vcmask 917312
    %26 = vst.msk [vmem:[#allocation0] ss:$8 sm:$0x3] %vm25, %v24
    %s27 = scalar_lea.vmem %s0, 12
    %s28 = smov 3
    %v29 = vld [vmem:[%s27] ss:$16 sm:%s28]
    %30 = vrot.lane.b32.xlu0 %v29, 96
    %v31 = vpop.permute.xlu0 %30
    %vm32 = vcmask 851712
    %33 = vst.msk [vmem:[#allocation0] ss:$8 sm:$0x3] %vm32, %v31
    %s34 = scalar_lea.vmem %s0, 11
    %s35 = smov 3
    %v36 = vld [vmem:[%s34] ss:$16 sm:%s35]
    %37 = vrot.lane.b32.xlu0 %v36, 88
    %v38 = vpop.permute.xlu0 %37
    %vm39 = vcmask 786112
    %40 = vst.msk [vmem:[#allocation0] ss:$8 sm:$0x3] %vm39, %v38
    %s41 = scalar_lea.vmem %s0, 10
    %s42 = smov 3
    %v43 = vld [vmem:[%s41] ss:$16 sm:%s42]
    %44 = vrot.lane.b32.xlu0 %v43, 80
    %v45 = vpop.permute.xlu0 %44
    %vm46 = vcmask 720512
    %47 = vst.msk [vmem:[#allocation0] ss:$8 sm:$0x3] %vm46, %v45
    %s48 = scalar_lea.vmem %s0, 9
    %s49 = smov 3
    %v50 = vld [vmem:[%s48] ss:$16 sm:%s49]
    %51 = vrot.lane.b32.xlu0 %v50, 72
    %v52 = vpop.permute.xlu0 %51
    %vm53 = vcmask 654912
    %54 = vst.msk [vmem:[#allocation0] ss:$8 sm:$0x3] %vm53, %v52
    %s55 = scalar_lea.vmem %s0, 8
    %s56 = smov 3
    %v57 = vld [vmem:[%s55] ss:$16 sm:%s56]
    %58 = vrot.lane.b32.xlu0 %v57, 64
    %v59 = vpop.permute.xlu0 %58
    %vm60 = vcmask 589312
    %61 = vst.msk [vmem:[#allocation0] ss:$8 sm:$0x3] %vm60, %v59
    %s62 = scalar_lea.vmem %s0, 7
    %s63 = smov 3
    %v64 = vld [vmem:[%s62] ss:$16 sm:%s63]
    %65 = vrot.lane.b32.xlu0 %v64, 56
    %v66 = vpop.permute.xlu0 %65
    %vm67 = vcmask 523712
    %68 = vst.msk [vmem:[#allocation0] ss:$8 sm:$0x3] %vm67, %v66
    %s69 = scalar_lea.vmem %s0, 6
    %s70 = smov 3
    %v71 = vld [vmem:[%s69] ss:$16 sm:%s70]
    %72 = vrot.lane.b32.xlu0 %v71, 48
    %v73 = vpop.permute.xlu0 %72
    %vm74 = vcmask 458112
    %75 = vst.msk [vmem:[#allocation0] ss:$8 sm:$0x3] %vm74, %v73
    %s76 = scalar_lea.vmem %s0, 5
    %s77 = smov 3
    %v78 = vld [vmem:[%s76] ss:$16 sm:%s77]
    %79 = vrot.lane.b32.xlu0 %v78, 40
    %v80 = vpop.permute.xlu0 %79
    %vm81 = vcmask 392512
    %82 = vst.msk [vmem:[#allocation0] ss:$8 sm:$0x3] %vm81, %v80
    %s83 = scalar_lea.vmem %s0, 4
    %s84 = smov 3
    %v85 = vld [vmem:[%s83] ss:$16 sm:%s84]
    %86 = vrot.lane.b32.xlu0 %v85, 32
    %v87 = vpop.permute.xlu0 %86
    %vm88 = vcmask 326912
    %89 = vst.msk [vmem:[#allocation0] ss:$8 sm:$0x3] %vm88, %v87
    %s90 = scalar_lea.vmem %s0, 3
    %s91 = smov 3
    %v92 = vld [vmem:[%s90] ss:$16 sm:%s91]
    %93 = vrot.lane.b32.xlu0 %v92, 24
    %v94 = vpop.permute.xlu0 %93
    %vm95 = vcmask 261312
    %96 = vst.msk [vmem:[#allocation0] ss:$8 sm:$0x3] %vm95, %v94
    %s97 = scalar_lea.vmem %s0, 2
    %s98 = smov 3
    %v99 = vld [vmem:[%s97] ss:$16 sm:%s98]
    %100 = vrot.lane.b32.xlu0 %v99, 16
    %v101 = vpop.permute.xlu0 %100
    %vm102 = vcmask 195712
    %103 = vst.msk [vmem:[#allocation0] ss:$8 sm:$0x3] %vm102, %v101
    %s104 = scalar_lea.vmem %s0, 1
    %s105 = smov 3
    %v106 = vld [vmem:[%s104] ss:$16 sm:%s105]
    %107 = vrot.lane.b32.xlu0 %v106, 8
    %v108 = vpop.permute.xlu0 %107
    %vm109 = vcmask 130112
    %110 = vst.msk [vmem:[#allocation0] ss:$8 sm:$0x3] %vm109, %v108
    %s112 = sshll.u32 1, 1
    %s113 = ssub.s32 %s112, 1
    %v115 = vld [vmem:[#allocation0] sm:%s113]
    %s116 = sshll.u32 1, 1
    %s117 = ssub.s32 %s116, 1
    %118 = vst [vmem:[%s1] sm:%s117] %v115
    %s119 = scalar_lea.vmem [#allocation0], 8
    %v120 = vld [vmem:[%s119] sm:%s113]
    %s121 = sshll.u32 1, 1
    %s122 = ssub.s32 %s121, 1
    %s123 = scalar_lea.vmem %s1, 1
    %124 = vst [vmem:[%s123] sm:%s122] %v120

// kernel: unet_up_block.1
$region0: #{unet_up_block.1}
  #allocation0 [shape = 'u32[]', space=smem, size = 0x4, offset = 0x4, fixed_abs, tag = 'smem constant byte address 0x4 - core index']
  #allocation1 [shape = 'u32[144,128]{1,0:T(1,128)}', space=vmem, size = 0x12000, scoped, tag = 'internal scratch']
  %s0 = inlined_call_operand.vmem [shape: bf16[2,16,64], index: 0, kind: input, shape index: {}]
  %s1 = inlined_call_operand.vmem [shape: bf16[1,36,16], index: 1, kind: input, shape index: {}]
  %s2 = inlined_call_operand.vmem [shape: bf16[64,128], index: 2, kind: input, shape index: {}]
  %s3 = inlined_call_operand.vmem [shape: bf16[3,128,256], index: 3, kind: input, shape index: {}]
  %s4 = inlined_call_operand.vmem [shape: f32[1,256], index: 4, kind: input, shape index: {}]
  %s5 = inlined_call_operand.vmem [shape: bf16[3,256,256], index: 5, kind: input, shape index: {}]
  %s6 = inlined_call_operand.vmem [shape: f32[1,256], index: 6, kind: input, shape index: {}]
  %s7 = inlined_call_operand.vmem [shape: bf16[2,32,256], index: 7, kind: output, shape index: {}]
  %s8 = sld [smem:[#allocation0]]
  $region61: #{unet_up_block.1} parent=0
    _
  %s10 = ssub.s32 1, %s8
  %s11 = scalar_select 0, %s10, %s8
  loop: start=0, step=1, limit=4
  $region2: #{unet_up_block.1} parent=0 // loop_pre_header
    _
  $region3: #{unet_up_block.1} parent=0 // loop_header
    %s13 = sphi 0, %s17
    %p14 = scmp.ge.s32.totalorder %s13, 4
    %s20 = sphi 0, %s32
    %s21 = sphi 0, %s28
    %s22 = sphi 0, %s20
    %s23 = sphi 0, %s21
    %s24 = sphi 0, %s22
    %s25 = sphi 0, %s23
    %s35 = sphi 0, %s37
    %s38 = sphi 0, %s35
    %s39 = sphi 0, %s38
    %s55 = sphi 0, %s39
    %s61 = sphi 0, %s63
    %s64 = sphi 0, %s61
    %s65 = sphi 0, %s64
    %s81 = sphi 0, %s65
    %s85 = sphi 0, %s85
    %s87 = sphi 0, %s85
    %s88 = sphi 0, %s87
    %s102 = sphi 0, %s88
    %s106 = sphi 0, %s106
    %s108 = sphi 0, %s106
    %s109 = sphi 0, %s108
    %s123 = sphi 0, %s109
    %s127 = sphi 0, %s127
    %s129 = sphi 0, %s127
    %s130 = sphi 0, %s129
    %s144 = sphi 0, %s130
    %s148 = sphi 0, %s148
    %s150 = sphi 0, %s148
    %s151 = sphi 0, %s150
    %s165 = sphi 0, %s151
    %s169 = sphi 0, %s169
    %s171 = sphi 0, %s169
    %s172 = sphi 0, %s171
    %s186 = sphi 0, %s172
    %s194 = sphi 0, %s196
    %s197 = sphi 0, %s194
    %s198 = sphi 0, %s197
    %s214 = sphi 0, %s198
  $region4: #{unet_up_block.1} parent=0 // loop_header_branch
    %16 = sbr.rel (%p14) target = $region8
  $region5: #{unet_up_block.1} parent=0 // loop_body
    %s18 = ssub.s32 %s13, 1
    %s19 = ssub.s32 %s13, 2
    %s26 = sadd.s32 1, %s21
    %p27 = scmp.ge.s32.totalorder %s26, 1
    %s28 = scalar_select %p27, 0, %s26
    %s29 = sadd.s32 1, %s20
    %s30 = scalar_select %p27, %s29, %s20
    %p31 = scmp.ge.s32.totalorder %s30, 2
    %s32 = scalar_select %p31, 0, %s30
    %s33 = ssub.s32 %s20, %s32
    %p34 = scmp.eq.s32.totalorder %s33, 0
    %s36 = sadd.s32 %s35, 1
    %s37 = scalar_select %p34, %s35, %s36
    %p40 = pneg %p34
    %p41 = scmp.eq.s32.totalorder %s13, 1
    %p42 = por %p40, %p41
    %p43 = scmp.ne.s32.totalorder %s35, %s38
    %p44 = scmp.eq.s32.totalorder %s13, 0
    %p45 = por %p43, %p44
    %p46 = scmp.ne.s32.totalorder %s35, %s38
    %p47 = scmp.eq.s32.totalorder %s18, 1
    %p48 = por %p46, %p47
    %p49 = scmp.ne.s32.totalorder %s38, %s39
    %p50 = scmp.eq.s32.totalorder %s18, 0
    %p51 = por %p49, %p50
    %p52 = scmp.ne.s32.totalorder %s38, %s39
    %p53 = scmp.eq.s32.totalorder %s19, 1
    %p54 = por %p52, %p53
    %p56 = scmp.ne.s32.totalorder %s39, %s55
    %p57 = scmp.eq.s32.totalorder %s19, 0
    %p58 = por %p56, %p57
    %s59 = ssub.s32 %s21, %s28
    %p60 = scmp.eq.s32.totalorder %s59, 0
    %s62 = sadd.s32 %s61, 1
    %s63 = scalar_select %p60, %s61, %s62
    %p66 = pneg %p60
    %p67 = scmp.eq.s32.totalorder %s13, 1
    %p68 = por %p66, %p67
    %p69 = scmp.ne.s32.totalorder %s61, %s64
    %p70 = scmp.eq.s32.totalorder %s13, 0
    %p71 = por %p69, %p70
    %p72 = scmp.ne.s32.totalorder %s61, %s64
    %p73 = scmp.eq.s32.totalorder %s18, 1
    %p74 = por %p72, %p73
    %p75 = scmp.ne.s32.totalorder %s64, %s65
    %p76 = scmp.eq.s32.totalorder %s18, 0
    %p77 = por %p75, %p76
    %p78 = scmp.ne.s32.totalorder %s64, %s65
    %p79 = scmp.eq.s32.totalorder %s19, 1
    %p80 = por %p78, %p79
    %p82 = scmp.ne.s32.totalorder %s65, %s81
    %p83 = scmp.eq.s32.totalorder %s19, 0
    %p84 = por %p82, %p83
    %s86 = sadd.s32 %s85, 1
    %p89 = scmp.eq.s32.totalorder %s13, 1
    %p90 = scmp.ne.s32.totalorder %s85, %s87
    %p91 = scmp.eq.s32.totalorder %s13, 0
    %p92 = por %p90, %p91
    %p93 = scmp.ne.s32.totalorder %s85, %s87
    %p94 = scmp.eq.s32.totalorder %s18, 1
    %p95 = por %p93, %p94
    %p96 = scmp.ne.s32.totalorder %s87, %s88
    %p97 = scmp.eq.s32.totalorder %s18, 0
    %p98 = por %p96, %p97
    %p99 = scmp.ne.s32.totalorder %s87, %s88
    %p100 = scmp.eq.s32.totalorder %s19, 1
    %p101 = por %p99, %p100
    %p103 = scmp.ne.s32.totalorder %s88, %s102
    %p104 = scmp.eq.s32.totalorder %s19, 0
    %p105 = por %p103, %p104
    %s107 = sadd.s32 %s106, 1
    %p110 = scmp.eq.s32.totalorder %s13, 1
    %p111 = scmp.ne.s32.totalorder %s106, %s108
    %p112 = scmp.eq.s32.totalorder %s13, 0
    %p113 = por %p111, %p112
    %p114 = scmp.ne.s32.totalorder %s106, %s108
    %p115 = scmp.eq.s32.totalorder %s18, 1
    %p116 = por %p114, %p115
    %p117 = scmp.ne.s32.totalorder %s108, %s109
    %p118 = scmp.eq.s32.totalorder %s18, 0
    %p119 = por %p117, %p118
    %p120 = scmp.ne.s32.totalorder %s108, %s109
    %p121 = scmp.eq.s32.totalorder %s19, 1
    %p122 = por %p120, %p121
    %p124 = scmp.ne.s32.totalorder %s109, %s123
    %p125 = scmp.eq.s32.totalorder %s19, 0
    %p126 = por %p124, %p125
    %s128 = sadd.s32 %s127, 1
    %p131 = scmp.eq.s32.totalorder %s13, 1
    %p132 = scmp.ne.s32.totalorder %s127, %s129
    %p133 = scmp.eq.s32.totalorder %s13, 0
    %p134 = por %p132, %p133
    %p135 = scmp.ne.s32.totalorder %s127, %s129
    %p136 = scmp.eq.s32.totalorder %s18, 1
    %p137 = por %p135, %p136
    %p138 = scmp.ne.s32.totalorder %s129, %s130
    %p139 = scmp.eq.s32.totalorder %s18, 0
    %p140 = por %p138, %p139
    %p141 = scmp.ne.s32.totalorder %s129, %s130
    %p142 = scmp.eq.s32.totalorder %s19, 1
    %p143 = por %p141, %p142
    %p145 = scmp.ne.s32.totalorder %s130, %s144
    %p146 = scmp.eq.s32.totalorder %s19, 0
    %p147 = por %p145, %p146
    %s149 = sadd.s32 %s148, 1
    %p152 = scmp.eq.s32.totalorder %s13, 1
    %p153 = scmp.ne.s32.totalorder %s148, %s150
    %p154 = scmp.eq.s32.totalorder %s13, 0
    %p155 = por %p153, %p154
    %p156 = scmp.ne.s32.totalorder %s148, %s150
    %p157 = scmp.eq.s32.totalorder %s18, 1
    %p158 = por %p156, %p157
    %p159 = scmp.ne.s32.totalorder %s150, %s151
    %p160 = scmp.eq.s32.totalorder %s18, 0
    %p161 = por %p159, %p160
    %p162 = scmp.ne.s32.totalorder %s150, %s151
    %p163 = scmp.eq.s32.totalorder %s19, 1
    %p164 = por %p162, %p163
    %p166 = scmp.ne.s32.totalorder %s151, %s165
    %p167 = scmp.eq.s32.totalorder %s19, 0
    %p168 = por %p166, %p167
    %s170 = sadd.s32 %s169, 1
    %p173 = scmp.eq.s32.totalorder %s13, 1
    %p174 = scmp.ne.s32.totalorder %s169, %s171
    %p175 = scmp.eq.s32.totalorder %s13, 0
    %p176 = por %p174, %p175
    %p177 = scmp.ne.s32.totalorder %s169, %s171
    %p178 = scmp.eq.s32.totalorder %s18, 1
    %p179 = por %p177, %p178
    %p180 = scmp.ne.s32.totalorder %s171, %s172
    %p181 = scmp.eq.s32.totalorder %s18, 0
    %p182 = por %p180, %p181
    %p183 = scmp.ne.s32.totalorder %s171, %s172
    %p184 = scmp.eq.s32.totalorder %s19, 1
    %p185 = por %p183, %p184
    %p187 = scmp.ne.s32.totalorder %s172, %s186
    %p188 = scmp.eq.s32.totalorder %s19, 0
    %p189 = por %p187, %p188
    %s190 = ssub.s32 %s20, %s32
    %s191 = ssub.s32 %s21, %s28
    %s192 = sor.u32 %s190, %s191
    %p193 = scmp.eq.s32.totalorder %s192, 0
    %s195 = sadd.s32 %s194, 1
    %s196 = scalar_select %p193, %s194, %s195
    %p199 = pneg %p193
    %p200 = scmp.eq.s32.totalorder %s13, 1
    %p201 = por %p199, %p200
    %p202 = scmp.ne.s32.totalorder %s194, %s197
    %p203 = scmp.eq.s32.totalorder %s13, 0
    %p204 = por %p202, %p203
    %p205 = scmp.ne.s32.totalorder %s194, %s197
    %p206 = scmp.eq.s32.totalorder %s18, 1
    %p207 = por %p205, %p206
    %p208 = scmp.ne.s32.totalorder %s197, %s198
    %p209 = scmp.eq.s32.totalorder %s18, 0
    %p210 = por %p208, %p209
    %p211 = scmp.ne.s32.totalorder %s197, %s198
    %p212 = scmp.eq.s32.totalorder %s19, 1
    %p213 = por %p211, %p212
    %p215 = scmp.ne.s32.totalorder %s198, %s214
    %p216 = scmp.eq.s32.totalorder %s19, 0
    %p217 = por %p215, %p216
    %p218 = scmp.le.s32.totalorder 1, %s13
    %p219 = scmp.lt.s32.totalorder %s13, 3
    %p220 = pnand %p218, %p219
    %p221 = pneg %p220
    // Predicated region
    $region9: #{unet_up_block.1} parent=5 // pred_check
      _
    $region10: #{unet_up_block.1} parent=5 // pred_check_branch
      %223 = sbr.rel (%p220) target = $region12
    $region11: #{unet_up_block.1} parent=5 // pred_region
      %s224 = ssub.s32 %s13, 1
      // Predicated region
      $region13: #{unet_up_block.1} parent=11 // pred_check
        %p225 = pneg %p77
      $region14: #{unet_up_block.1} parent=11 // pred_check_branch
        %227 = sbr.rel (%p225) target = $region16
      $region15: #{unet_up_block.1} parent=11 // pred_region
        %p228 = scmp.lt.s32.totalorder %s23, 0
        %s229 = scalar_select %p228, %s23, 0
        %s230 = smul.addr %s229, 5
        %s231 = smul.addr %s230, 4
        %s232 = scalar_lea.vmem %s1, %s231
      $region16: #{unet_up_block.1} parent=11 // pred_fallthru
        _
      // Predicated region
      $region17: #{unet_up_block.1} parent=11 // pred_check
        %p233 = pneg %p98
      $region18: #{unet_up_block.1} parent=11 // pred_check_branch
        %235 = sbr.rel (%p233) target = $region20
      $region19: #{unet_up_block.1} parent=11 // pred_region
        _
      $region20: #{unet_up_block.1} parent=11 // pred_fallthru
        _
      // Predicated region
      $region21: #{unet_up_block.1} parent=11 // pred_check
        %p236 = pneg %p119
      $region22: #{unet_up_block.1} parent=11 // pred_check_branch
        %238 = sbr.rel (%p236) target = $region24
      $region23: #{unet_up_block.1} parent=11 // pred_region
        _
      $region24: #{unet_up_block.1} parent=11 // pred_fallthru
        _
      // Predicated region
      $region25: #{unet_up_block.1} parent=11 // pred_check
        %p239 = pneg %p140
      $region26: #{unet_up_block.1} parent=11 // pred_check_branch
        %241 = sbr.rel (%p239) target = $region28
      $region27: #{unet_up_block.1} parent=11 // pred_region
        _
      $region28: #{unet_up_block.1} parent=11 // pred_fallthru
        _
      // Predicated region
      $region29: #{unet_up_block.1} parent=11 // pred_check
        %p242 = pneg %p161
      $region30: #{unet_up_block.1} parent=11 // pred_check_branch
        %244 = sbr.rel (%p242) target = $region32
      $region31: #{unet_up_block.1} parent=11 // pred_region
        _
      $region32: #{unet_up_block.1} parent=11 // pred_fallthru
        _
      // Predicated region
      $region33: #{unet_up_block.1} parent=11 // pred_check
        %p245 = pneg %p182
      $region34: #{unet_up_block.1} parent=11 // pred_check_branch
        %247 = sbr.rel (%p245) target = $region36
      $region35: #{unet_up_block.1} parent=11 // pred_region
        _
      $region36: #{unet_up_block.1} parent=11 // pred_fallthru
        _
    $region12: #{unet_up_block.1} parent=5 // pred_fallthru
      _
    %p248 = scmp.lt.s32.totalorder %s13, 2
    // Predicated region
    $region37: #{unet_up_block.1} parent=5 // pred_check
      %p249 = pneg %p248
    $region38: #{unet_up_block.1} parent=5 // pred_check_branch
      %251 = sbr.rel (%p249) target = $region40
    $region39: #{unet_up_block.1} parent=5 // pred_region
      // Predicated region
      $region41: #{unet_up_block.1} parent=39 // pred_check
        %p252 = pneg %p45
      $region42: #{unet_up_block.1} parent=39 // pred_check_branch
        %254 = sbr.rel (%p252) target = $region44
      $region43: #{unet_up_block.1} parent=39 // pred_region
        %p255 = scmp.lt.s32.totalorder %s20, 1
        %s256 = scalar_select %p255, %s20, 1
        %s257 = smul.addr %s256, 2
        %s258 = smul.addr %s257, 4
        %s259 = scalar_lea.vmem %s0, %s258
      $region44: #{unet_up_block.1} parent=39 // pred_fallthru
        _
    $region40: #{unet_up_block.1} parent=5 // pred_fallthru
      _
    %p260 = scmp.le.s32.totalorder 1, %s13
    %p261 = scmp.lt.s32.totalorder %s13, 3
    %p262 = pnand %p260, %p261
    %p263 = pneg %p262
    // Predicated region
    $region45: #{unet_up_block.1} parent=5 // pred_check
      _
    $region46: #{unet_up_block.1} parent=5 // pred_check_branch
      %265 = sbr.rel (%p262) target = $region48
    $region47: #{unet_up_block.1} parent=5 // pred_region
      %s266 = ssub.s32 %s13, 1
      %p267 = scmp.lt.s32.totalorder %s22, 1
      %s268 = scalar_select %p267, %s22, 1
      %s269 = smul.addr %s268, 2
      %s270 = smul.addr %s269, 4
      %s271 = scalar_lea.vmem %s0, %s270
      %p272 = pneg %p51
      %p273 = pneg %p48
      %p274 = scmp.lt.s32.totalorder %s23, 0
      %s275 = scalar_select %p274, %s23, 0
      %s276 = smul.addr %s275, 5
      %s277 = smul.addr %s276, 4
      %s278 = scalar_lea.vmem %s1, %s277
      %p279 = pneg %p77
      %p280 = pneg %p74
      %p281 = pneg %p98
      %p282 = pneg %p95
      %p283 = pneg %p119
      %p284 = pneg %p116
      %p285 = pneg %p140
      %p286 = pneg %p137
      %p287 = pneg %p161
      %p288 = pneg %p158
      %p289 = pneg %p182
      %p290 = pneg %p179
      %p291 = pneg %p210
      %p292 = pneg %p207
      %s293 = smul.u32 4, %s23
      %p294 = scmp.lt.s32.totalorder %s22, 1
      %s295 = scalar_select %p294, %s22, 1
      %p296 = scmp.lt.s32.totalorder %s293, 3
      %s297 = scalar_select %p296, %s293, 3
      %s298 = smul.addr %s297, 2
      %s299 = smul.addr %s295, 8
      %s300 = sadd.s32 %s298, %s299
      %s301 = smul.addr %s300, 4
      %s302 = scalar_lea.vmem %s7, %s301
      %p303 = scmp.lt.s32.totalorder %s22, 1
      %s304 = scalar_select %p303, %s22, 1
      %s305 = smul.addr %s304, 2
      %s306 = smul.addr %s305, 4
      %s307 = scalar_lea.vmem %s0, %s306
      %p308 = scmp.lt.s32.totalorder %s23, 0
      %s309 = scalar_select %p308, %s23, 0
      %s310 = smul.addr %s309, 5
      %s311 = smul.addr %s310, 4
      %s312 = scalar_lea.vmem %s1, %s311
      %s313 = smul.u32 4, %s23
      %p314 = scmp.lt.s32.totalorder %s22, 1
      %s315 = scalar_select %p314, %s22, 1
      %p316 = scmp.lt.s32.totalorder %s313, 3
      %s317 = scalar_select %p316, %s313, 3
      %s318 = smul.addr %s317, 2
      %s319 = smul.addr %s315, 8
      %s320 = sadd.s32 %s318, %s319
      %s321 = smul.addr %s320, 4
      %s322 = scalar_lea.vmem %s7, %s321
      %s323 = smul.u32 4, %s23
      %v325 = vld [vmem:[%s307] sm:$0xf]
      %v326 = vld [vmem:[%s307 + $0x4] sm:$0xf]
      %v327 = vld [vmem:[%s312] sm:$0xf]
      %v328 = vld [vmem:[%s312 + $0x4] sm:$0xf]
      %v329 = vld [vmem:[%s312 + $0x8] sm:$0xf]
      %v330 = vld [vmem:[%s312 + $0xc] sm:$0xf]
      %v331 = vld [vmem:[%s312 + $0x10] sm:$0x3]
      %v337 = vunpack.c.l.b16 %v327
      %v338 = vunpack.c.l.b16 %v328
      %v339 = vunpack.c.l.b16 %v329
      %v340 = vunpack.c.l.b16 %v330
      %v341 = vunpack.c.l.b16 %v331
      %v342 = vpack.c.b16 %v338, %v337
      %v343 = vpack.c.b16 %v340, %v339
      %v344 = vpack.c.b16 %v341, %v341
      %v347 = vunpack.c.l.b16 %v325
      %v348 = vunpack.c.l.b16 %v326
      %v349 = vpack.c.b16 %v348, %v347
      %vm351 = vcmask 130048
      %v353 = vsel %vm351, %v342, 0
      %v356 = vsel %vm351, %v343, 0
      %v359 = vsel %vm351, %v344, 0
      %361 = vmatprep.subr.bf16.mxu0 0
      %362 = vmatpush1.bf16.msra.mxu0 0
      %363 = vmatprep.subr.bf16.mxu0 0
      %364 = vmatpush1.bf16.msra.mxu0 0
      %365 = vmatprep.subr.bf16.mxu0 0
      %366 = vmatpush1.bf16.msra.mxu0 0
      %367 = vmatprep.subr.bf16.mxu0 0
      %368 = vmatpush1.bf16.msra.mxu0 0
      %369 = vmatprep.subr.bf16.mxu0 0
      %370 = vmatpush1.bf16.msra.mxu0 0
      %371 = vmatprep.subr.bf16.mxu0 0
      %372 = vmatpush1.bf16.msra.mxu0 0
      %373 = vmatprep.subr.bf16.mxu0 0
      %374 = vmatpush1.bf16.msra.mxu0 0
      %375 = vmatprep.subr.bf16.mxu0 0
      %376 = vmatpush1.bf16.msra.mxu0 %v349
      %377 = vmatprep.subr.bf16.mxu0 0
      %378 = vmatpush2.bf16.msra.mxu0 0
      %379 = vmatprep.subr.bf16.mxu0 0
      %380 = vmatpush2.bf16.msra.mxu0 0
      %381 = vmatprep.subr.bf16.mxu0 0
      %382 = vmatpush2.bf16.msra.mxu0 0
      %383 = vmatprep.subr.bf16.mxu0 0
      %384 = vmatpush2.bf16.msra.mxu0 0
      %385 = vmatprep.subr.bf16.mxu0 0
      %386 = vmatpush2.bf16.msra.mxu0 0
      %387 = vmatprep.subr.bf16.mxu0 0
      %388 = vmatpush2.bf16.msra.mxu0 0
      %389 = vmatprep.subr.bf16.mxu0 0
      %390 = vmatpush2.bf16.msra.mxu0 0
      %391 = vmatprep.subr.bf16.mxu0 0
      %392 = vmatpush2.bf16.msra.mxu0 0
      %393 = vmatprep.mubr.bf16.mxu0 0
      %394 = vmatmul.mubr.bf16.gmra.mxu0 %v353
      %v395 = vpop.f32.mrf.mxu0
      %v396 = vadd.f32 0.0, %v395
      %v397 = vpop.f32.mrf.mxu0
      %v398 = vpop.f32.mrf.mxu0
      %v399 = vadd.f32 0.0, %v398
      %v400 = vpop.f32.mrf.mxu0
      %401 = vmatprep.mubr.bf16.mxu0 0
      %402 = vmatmul.mubr.bf16.gmra.mxu0 %v356
      %v403 = vpop.f32.mrf.mxu0
      %v404 = vadd.f32 0.0, %v403
      %v405 = vpop.f32.mrf.mxu0
      %v406 = vpop.f32.mrf.mxu0
      %v407 = vadd.f32 0.0, %v406
      %v408 = vpop.f32.mrf.mxu0
      %409 = vmatprep.mubr.bf16.mxu0 0
      %410 = vmatmul.mubr.bf16.gmra.mxu0 %v359
      %v411 = vpop.f32.mrf.mxu0
      %v412 = vadd.f32 0.0, %v411
      %v413 = vpop.f32.mrf.mxu0
      %v414 = vpop.f32.mrf.mxu0
      %v415 = vpop.f32.mrf.mxu0
      %416 = vdwg.mxu0
      %v417 = vpack.c.bf16 %v399, %v396
      %v418 = vpack.c.bf16 %v407, %v404
      %v419 = vpack.c.bf16 %v412, %v412
      %v420 = vld [vmem:[%s2] sm:$0xf]
      %v421 = vld [vmem:[%s2 + $0x4] sm:$0xf]
      %v422 = vld [vmem:[%s2 + $0x8] sm:$0xf]
      %v423 = vld [vmem:[%s2 + $0xc] sm:$0xf]
      %v424 = vld [vmem:[%s2 + $0x10] sm:$0xf]
      %v425 = vld [vmem:[%s2 + $0x14] sm:$0xf]
      %v426 = vld [vmem:[%s2 + $0x18] sm:$0xf]
      %v427 = vld [vmem:[%s2 + $0x1c] sm:$0xf]
      %v436 = vunpack.c.l.b16 %v420
      %v437 = vunpack.c.l.b16 %v421
      %v438 = vunpack.c.l.b16 %v422
      %v439 = vunpack.c.l.b16 %v423
      %v440 = vunpack.c.l.b16 %v424
      %v441 = vunpack.c.l.b16 %v425
      %v442 = vunpack.c.l.b16 %v426
      %v443 = vunpack.c.l.b16 %v427
      %v444 = vpack.c.b16 %v437, %v436
      %v445 = vpack.c.b16 %v439, %v438
      %v446 = vpack.c.b16 %v441, %v440
      %v447 = vpack.c.b16 %v443, %v442
      %vm452 = vcmask 523264
      %v454 = vsel %vm452, %v417, 0
      %v457 = vsel %vm452, %v418, 0
      %v460 = vsel %vm452, %v419, 0
      %462 = vmatprep.subr.bf16.mxu0 0
      %463 = vmatpush1.bf16.msra.mxu0 0
      %464 = vmatprep.subr.bf16.mxu0 0
      %465 = vmatpush1.bf16.msra.mxu0 0
      %466 = vmatprep.subr.bf16.mxu0 0
      %467 = vmatpush1.bf16.msra.mxu0 0
      %468 = vmatprep.subr.bf16.mxu0 0
      %469 = vmatpush1.bf16.msra.mxu0 0
      %470 = vmatprep.subr.bf16.mxu0 0
      %471 = vmatpush1.bf16.msra.mxu0 %v447
      %472 = vmatprep.subr.bf16.mxu0 0
      %473 = vmatpush1.bf16.msra.mxu0 %v446
      %474 = vmatprep.subr.bf16.mxu0 0
      %475 = vmatpush1.bf16.msra.mxu0 %v445
      %476 = vmatprep.subr.bf16.mxu0 0
      %477 = vmatpush1.bf16.msra.mxu0 %v444
      %478 = vmatprep.subr.bf16.mxu0 0
      %479 = vmatpush2.bf16.msra.mxu0 0
      %480 = vmatprep.subr.bf16.mxu0 0
      %481 = vmatpush2.bf16.msra.mxu0 0
      %482 = vmatprep.subr.bf16.mxu0 0
      %483 = vmatpush2.bf16.msra.mxu0 0
      %484 = vmatprep.subr.bf16.mxu0 0
      %485 = vmatpush2.bf16.msra.mxu0 0
      %486 = vmatprep.subr.bf16.mxu0 0
      %487 = vmatpush2.bf16.msra.mxu0 0
      %488 = vmatprep.subr.bf16.mxu0 0
      %489 = vmatpush2.bf16.msra.mxu0 0
      %490 = vmatprep.subr.bf16.mxu0 0
      %491 = vmatpush2.bf16.msra.mxu0 0
      %492 = vmatprep.subr.bf16.mxu0 0
      %493 = vmatpush2.bf16.msra.mxu0 0
      %494 = vmatprep.mubr.bf16.mxu0 0
      %495 = vmatmul.mubr.bf16.gmra.mxu0 %v454
      %v496 = vpop.f32.mrf.mxu0
      %v497 = vadd.f32 0.0, %v496
      %v498 = vpop.f32.mrf.mxu0
      %v499 = vpop.f32.mrf.mxu0
      %v500 = vadd.f32 0.0, %v499
      %v501 = vpop.f32.mrf.mxu0
      %502 = vmatprep.mubr.bf16.mxu0 0
      %503 = vmatmul.mubr.bf16.gmra.mxu0 %v457
      %v504 = vpop.f32.mrf.mxu0
      %v505 = vadd.f32 0.0, %v504
      %v506 = vpop.f32.mrf.mxu0
      %v507 = vpop.f32.mrf.mxu0
      %v508 = vadd.f32 0.0, %v507
      %v509 = vpop.f32.mrf.mxu0
      %510 = vmatprep.mubr.bf16.mxu0 0
      %511 = vmatmul.mubr.bf16.gmra.mxu0 %v460
      %v512 = vpop.f32.mrf.mxu0
      %v513 = vadd.f32 0.0, %v512
      %v514 = vpop.f32.mrf.mxu0
      %v515 = vpop.f32.mrf.mxu0
      %v516 = vpop.f32.mrf.mxu0
      %517 = vdwg.mxu0
      %v518 = vpack.c.bf16 %v500, %v497
      %v519 = vpack.c.bf16 %v508, %v505
      %v520 = vpack.c.bf16 %v513, %v513
      %v521 = vld [vmem:[%s3] sm:$0xff]
      %v522 = vld [vmem:[%s3 + $0x8] sm:$0xff]
      %v523 = vld [vmem:[%s3 + $0x10] sm:$0xff]
      %v524 = vld [vmem:[%s3 + $0x18] sm:$0xff]
      %v525 = vld [vmem:[%s3 + $0x20] sm:$0xff]
      %v526 = vld [vmem:[%s3 + $0x28] sm:$0xff]
      %v527 = vld [vmem:[%s3 + $0x30] sm:$0xff]
      %v528 = vld [vmem:[%s3 + $0x38] sm:$0xff]
      %v529 = vld [vmem:[%s3 + $0x40] sm:$0xff]
      %v530 = vld [vmem:[%s3 + $0x48] sm:$0xff]
      %v531 = vld [vmem:[%s3 + $0x50] sm:$0xff]
      %v532 = vld [vmem:[%s3 + $0x58] sm:$0xff]
      %v533 = vld [vmem:[%s3 + $0x60] sm:$0xff]
      %v534 = vld [vmem:[%s3 + $0x68] sm:$0xff]
      %v535 = vld [vmem:[%s3 + $0x70] sm:$0xff]
      %v536 = vld [vmem:[%s3 + $0x78] sm:$0xff]
      %s537 = scalar_lea.vmem %s3, 128
      %v538 = vld [vmem:[%s537] sm:$0xff]
      %v539 = vld [vmem:[%s537 + $0x8] sm:$0xff]
      %v540 = vld [vmem:[%s537 + $0x10] sm:$0xff]
      %v541 = vld [vmem:[%s537 + $0x18] sm:$0xff]
      %v542 = vld [vmem:[%s537 + $0x20] sm:$0xff]
      %v543 = vld [vmem:[%s537 + $0x28] sm:$0xff]
      %v544 = vld [vmem:[%s537 + $0x30] sm:$0xff]
      %v545 = vld [vmem:[%s537 + $0x38] sm:$0xff]
      %v546 = vld [vmem:[%s537 + $0x40] sm:$0xff]
      %v547 = vld [vmem:[%s537 + $0x48] sm:$0xff]
      %v548 = vld [vmem:[%s537 + $0x50] sm:$0xff]
      %v549 = vld [vmem:[%s537 + $0x58] sm:$0xff]
      %v550 = vld [vmem:[%s537 + $0x60] sm:$0xff]
      %v551 = vld [vmem:[%s537 + $0x68] sm:$0xff]
      %v552 = vld [vmem:[%s537 + $0x70] sm:$0xff]
      %v553 = vld [vmem:[%s537 + $0x78] sm:$0xff]
      %vm554 = vsmask.f32 7424
      %v556 = vshrl.u32 %v518, 16
      %v558 = vshll.u32 %v518, 16
      %v560 = vrot.slane %v558, 1
      %v561 = vor.u32 %v556, %v560
      %v563 = vshll.u32 %v519, 16
      %v565 = vrot.slane %v563, 1
      %v566 = vsel %vm554, %v561, %v565
      %v567 = vshrl.u32 %v519, 16
      %v569 = vor.u32 %v567, %v565
      %v571 = vshll.u32 %v520, 16
      %v573 = vrot.slane %v571, 1
      %v574 = vsel %vm554, %v569, %v573
      %v575 = vshrl.u32 %v520, 16
      %v577 = vor.u32 %v575, %v573
      %v597 = vunpack.c.l.b16 %v538
      %v598 = vunpack.c.h.b16 %v538
      %v599 = vunpack.c.l.b16 %v539
      %v600 = vunpack.c.h.b16 %v539
      %v601 = vunpack.c.l.b16 %v540
      %v602 = vunpack.c.h.b16 %v540
      %v603 = vunpack.c.l.b16 %v541
      %v604 = vunpack.c.h.b16 %v541
      %v605 = vunpack.c.l.b16 %v542
      %v606 = vunpack.c.h.b16 %v542
      %v607 = vunpack.c.l.b16 %v543
      %v608 = vunpack.c.h.b16 %v543
      %v609 = vunpack.c.l.b16 %v544
      %v610 = vunpack.c.h.b16 %v544
      %v611 = vunpack.c.l.b16 %v545
      %v612 = vunpack.c.h.b16 %v545
      %v613 = vunpack.c.l.b16 %v546
      %v614 = vunpack.c.h.b16 %v546
      %v615 = vunpack.c.l.b16 %v547
      %v616 = vunpack.c.h.b16 %v547
      %v617 = vunpack.c.l.b16 %v548
      %v618 = vunpack.c.h.b16 %v548
      %v619 = vunpack.c.l.b16 %v549
      %v620 = vunpack.c.h.b16 %v549
      %v621 = vunpack.c.l.b16 %v550
      %v622 = vunpack.c.h.b16 %v550
      %v623 = vunpack.c.l.b16 %v551
      %v624 = vunpack.c.h.b16 %v551
      %v625 = vunpack.c.l.b16 %v552
      %v626 = vunpack.c.h.b16 %v552
      %v627 = vunpack.c.l.b16 %v553
      %v628 = vunpack.c.h.b16 %v553
      %v629 = vpack.c.b16 %v599, %v597
      %v630 = vpack.c.b16 %v600, %v598
      %v631 = vpack.c.b16 %v603, %v601
      %v632 = vpack.c.b16 %v604, %v602
      %v633 = vpack.c.b16 %v607, %v605
      %v634 = vpack.c.b16 %v608, %v606
      %v635 = vpack.c.b16 %v611, %v609
      %v636 = vpack.c.b16 %v612, %v610
      %v637 = vpack.c.b16 %v615, %v613
      %v638 = vpack.c.b16 %v616, %v614
      %v639 = vpack.c.b16 %v619, %v617
      %v640 = vpack.c.b16 %v620, %v618
      %v641 = vpack.c.b16 %v623, %v621
      %v642 = vpack.c.b16 %v624, %v622
      %v643 = vpack.c.b16 %v627, %v625
      %v644 = vpack.c.b16 %v628, %v626
      %661 = vmatprep.subr.bf16.mxu0 %v644
      %662 = vmatpush1.bf16.msra.mxu0 %v643
      %663 = vmatprep.subr.bf16.mxu0 %v642
      %664 = vmatpush1.bf16.msra.mxu0 %v641
      %665 = vmatprep.subr.bf16.mxu0 %v640
      %666 = vmatpush1.bf16.msra.mxu0 %v639
      %667 = vmatprep.subr.bf16.mxu0 %v638
      %668 = vmatpush1.bf16.msra.mxu0 %v637
      %669 = vmatprep.subr.bf16.mxu0 %v636
      %670 = vmatpush1.bf16.msra.mxu0 %v635
      %671 = vmatprep.subr.bf16.mxu0 %v634
      %672 = vmatpush1.bf16.msra.mxu0 %v633
      %673 = vmatprep.subr.bf16.mxu0 %v632
      %674 = vmatpush1.bf16.msra.mxu0 %v631
      %675 = vmatprep.subr.bf16.mxu0 %v630
      %676 = vmatpush1.bf16.msra.mxu0 %v629
      %677 = vmatprep.subr.bf16.mxu0 0
      %678 = vmatpush2.bf16.msra.mxu0 0
      %679 = vmatprep.subr.bf16.mxu0 0
      %680 = vmatpush2.bf16.msra.mxu0 0
      %681 = vmatprep.subr.bf16.mxu0 0
      %682 = vmatpush2.bf16.msra.mxu0 0
      %683 = vmatprep.subr.bf16.mxu0 0
      %684 = vmatpush2.bf16.msra.mxu0 0
      %685 = vmatprep.subr.bf16.mxu0 0
      %686 = vmatpush2.bf16.msra.mxu0 0
      %687 = vmatprep.subr.bf16.mxu0 0
      %688 = vmatpush2.bf16.msra.mxu0 0
      %689 = vmatprep.subr.bf16.mxu0 0
      %690 = vmatpush2.bf16.msra.mxu0 0
      %691 = vmatprep.subr.bf16.mxu0 0
      %692 = vmatpush2.bf16.msra.mxu0 0
      %693 = vmatprep.mubr.bf16.mxu0 0
      %694 = vmatmul.mubr.bf16.gmra.mxu0 %v566
      %v695 = vpop.f32.mrf.mxu0
      %v696 = vadd.f32 0.0, %v695
      %v697 = vpop.f32.mrf.mxu0
      %v698 = vadd.f32 0.0, %v697
      %v699 = vpop.f32.mrf.mxu0
      %v700 = vadd.f32 0.0, %v699
      %v701 = vpop.f32.mrf.mxu0
      %v702 = vadd.f32 0.0, %v701
      %703 = vmatprep.mubr.bf16.mxu0 0
      %704 = vmatmul.mubr.bf16.gmra.mxu0 %v574
      %v705 = vpop.f32.mrf.mxu0
      %v706 = vadd.f32 0.0, %v705
      %v707 = vpop.f32.mrf.mxu0
      %v708 = vadd.f32 0.0, %v707
      %v709 = vpop.f32.mrf.mxu0
      %v710 = vadd.f32 0.0, %v709
      %v711 = vpop.f32.mrf.mxu0
      %v712 = vadd.f32 0.0, %v711
      %713 = vmatprep.mubr.bf16.mxu0 0
      %714 = vmatmul.mubr.bf16.gmra.mxu0 %v577
      %v715 = vpop.f32.mrf.mxu0
      %v716 = vadd.f32 0.0, %v715
      %v717 = vpop.f32.mrf.mxu0
      %v718 = vadd.f32 0.0, %v717
      %v719 = vpop.f32.mrf.mxu0
      %v720 = vpop.f32.mrf.mxu0
      %721 = vdwg.mxu0
      %v738 = vunpack.c.l.b16 %v521
      %v739 = vunpack.c.h.b16 %v521
      %v740 = vunpack.c.l.b16 %v522
      %v741 = vunpack.c.h.b16 %v522
      %v742 = vunpack.c.l.b16 %v523
      %v743 = vunpack.c.h.b16 %v523
      %v744 = vunpack.c.l.b16 %v524
      %v745 = vunpack.c.h.b16 %v524
      %v746 = vunpack.c.l.b16 %v525
      %v747 = vunpack.c.h.b16 %v525
      %v748 = vunpack.c.l.b16 %v526
      %v749 = vunpack.c.h.b16 %v526
      %v750 = vunpack.c.l.b16 %v527
      %v751 = vunpack.c.h.b16 %v527
      %v752 = vunpack.c.l.b16 %v528
      %v753 = vunpack.c.h.b16 %v528
      %v754 = vunpack.c.l.b16 %v529
      %v755 = vunpack.c.h.b16 %v529
      %v756 = vunpack.c.l.b16 %v530
      %v757 = vunpack.c.h.b16 %v530
      %v758 = vunpack.c.l.b16 %v531
      %v759 = vunpack.c.h.b16 %v531
      %v760 = vunpack.c.l.b16 %v532
      %v761 = vunpack.c.h.b16 %v532
      %v762 = vunpack.c.l.b16 %v533
      %v763 = vunpack.c.h.b16 %v533
      %v764 = vunpack.c.l.b16 %v534
      %v765 = vunpack.c.h.b16 %v534
      %v766 = vunpack.c.l.b16 %v535
      %v767 = vunpack.c.h.b16 %v535
      %v768 = vunpack.c.l.b16 %v536
      %v769 = vunpack.c.h.b16 %v536
      %v770 = vpack.c.b16 %v740, %v738
      %v771 = vpack.c.b16 %v741, %v739
      %v772 = vpack.c.b16 %v744, %v742
      %v773 = vpack.c.b16 %v745, %v743
      %v774 = vpack.c.b16 %v748, %v746
      %v775 = vpack.c.b16 %v749, %v747
      %v776 = vpack.c.b16 %v752, %v750
      %v777 = vpack.c.b16 %v753, %v751
      %v778 = vpack.c.b16 %v756, %v754
      %v779 = vpack.c.b16 %v757, %v755
      %v780 = vpack.c.b16 %v760, %v758
      %v781 = vpack.c.b16 %v761, %v759
      %v782 = vpack.c.b16 %v764, %v762
      %v783 = vpack.c.b16 %v765, %v763
      %v784 = vpack.c.b16 %v768, %v766
      %v785 = vpack.c.b16 %v769, %v767
      %802 = vmatprep.subr.bf16.mxu0 %v785
      %803 = vmatpush1.bf16.msra.mxu0 %v784
      %804 = vmatprep.subr.bf16.mxu0 %v783
      %805 = vmatpush1.bf16.msra.mxu0 %v782
      %806 = vmatprep.subr.bf16.mxu0 %v781
      %807 = vmatpush1.bf16.msra.mxu0 %v780
      %808 = vmatprep.subr.bf16.mxu0 %v779
      %809 = vmatpush1.bf16.msra.mxu0 %v778
      %810 = vmatprep.subr.bf16.mxu0 %v777
      %811 = vmatpush1.bf16.msra.mxu0 %v776
      %812 = vmatprep.subr.bf16.mxu0 %v775
      %813 = vmatpush1.bf16.msra.mxu0 %v774
      %814 = vmatprep.subr.bf16.mxu0 %v773
      %815 = vmatpush1.bf16.msra.mxu0 %v772
      %816 = vmatprep.subr.bf16.mxu0 %v771
      %817 = vmatpush1.bf16.msra.mxu0 %v770
      %818 = vmatprep.subr.bf16.mxu0 0
      %819 = vmatpush2.bf16.msra.mxu0 0
      %820 = vmatprep.subr.bf16.mxu0 0
      %821 = vmatpush2.bf16.msra.mxu0 0
      %822 = vmatprep.subr.bf16.mxu0 0
      %823 = vmatpush2.bf16.msra.mxu0 0
      %824 = vmatprep.subr.bf16.mxu0 0
      %825 = vmatpush2.bf16.msra.mxu0 0
      %826 = vmatprep.subr.bf16.mxu0 0
      %827 = vmatpush2.bf16.msra.mxu0 0
      %828 = vmatprep.subr.bf16.mxu0 0
      %829 = vmatpush2.bf16.msra.mxu0 0
      %830 = vmatprep.subr.bf16.mxu0 0
      %831 = vmatpush2.bf16.msra.mxu0 0
      %832 = vmatprep.subr.bf16.mxu0 0
      %833 = vmatpush2.bf16.msra.mxu0 0
      %834 = vmatprep.mubr.bf16.mxu0 0
      %835 = vmatmul.mubr.bf16.gmra.mxu0 %v518
      %v836 = vpop.f32.mrf.mxu0
      %v837 = vadd.f32 %v696, %v836
      %v838 = vpop.f32.mrf.mxu0
      %v839 = vadd.f32 %v698, %v838
      %v840 = vpop.f32.mrf.mxu0
      %v841 = vadd.f32 %v700, %v840
      %v842 = vpop.f32.mrf.mxu0
      %v843 = vadd.f32 %v702, %v842
      %844 = vmatprep.mubr.bf16.mxu0 0
      %845 = vmatmul.mubr.bf16.gmra.mxu0 %v519
      %v846 = vpop.f32.mrf.mxu0
      %v847 = vadd.f32 %v706, %v846
      %v848 = vpop.f32.mrf.mxu0
      %v849 = vadd.f32 %v708, %v848
      %v850 = vpop.f32.mrf.mxu0
      %v851 = vadd.f32 %v710, %v850
      %v852 = vpop.f32.mrf.mxu0
      %v853 = vadd.f32 %v712, %v852
      %854 = vmatprep.mubr.bf16.mxu0 0
      %855 = vmatmul.mubr.bf16.gmra.mxu0 %v520
      %v856 = vpop.f32.mrf.mxu0
      %v857 = vadd.f32 %v716, %v856
      %v858 = vpop.f32.mrf.mxu0
      %v859 = vadd.f32 %v718, %v858
      %v860 = vpop.f32.mrf.mxu0
      %v861 = vpop.f32.mrf.mxu0
      %862 = vdwg.mxu0
      %s863 = scalar_lea.vmem %s3, 256
      %v864 = vld [vmem:[%s863] sm:$0xff]
      %v865 = vld [vmem:[%s863 + $0x8] sm:$0xff]
      %v866 = vld [vmem:[%s863 + $0x10] sm:$0xff]
      %v867 = vld [vmem:[%s863 + $0x18] sm:$0xff]
      %v868 = vld [vmem:[%s863 + $0x20] sm:$0xff]
      %v869 = vld [vmem:[%s863 + $0x28] sm:$0xff]
      %v870 = vld [vmem:[%s863 + $0x30] sm:$0xff]
      %v871 = vld [vmem:[%s863 + $0x38] sm:$0xff]
      %v872 = vld [vmem:[%s863 + $0x40] sm:$0xff]
      %v873 = vld [vmem:[%s863 + $0x48] sm:$0xff]
      %v874 = vld [vmem:[%s863 + $0x50] sm:$0xff]
      %v875 = vld [vmem:[%s863 + $0x58] sm:$0xff]
      %v876 = vld [vmem:[%s863 + $0x60] sm:$0xff]
      %v877 = vld [vmem:[%s863 + $0x68] sm:$0xff]
      %v878 = vld [vmem:[%s863 + $0x70] sm:$0xff]
      %v879 = vld [vmem:[%s863 + $0x78] sm:$0xff]
      %vm883 = vcmask 1046528
      %v884 = vrot.slane %v518, 1
      %v885 = vrot.slane %v519, 1
      %v886 = vsel %vm883, %v884, %v885
      %v887 = vrot.slane %v520, 1
      %v888 = vsel %vm883, %v885, %v887
      %v908 = vunpack.c.l.b16 %v864
      %v909 = vunpack.c.h.b16 %v864
      %v910 = vunpack.c.l.b16 %v865
      %v911 = vunpack.c.h.b16 %v865
      %v912 = vunpack.c.l.b16 %v866
      %v913 = vunpack.c.h.b16 %v866
      %v914 = vunpack.c.l.b16 %v867
      %v915 = vunpack.c.h.b16 %v867
      %v916 = vunpack.c.l.b16 %v868
      %v917 = vunpack.c.h.b16 %v868
      %v918 = vunpack.c.l.b16 %v869
      %v919 = vunpack.c.h.b16 %v869
      %v920 = vunpack.c.l.b16 %v870
      %v921 = vunpack.c.h.b16 %v870
      %v922 = vunpack.c.l.b16 %v871
      %v923 = vunpack.c.h.b16 %v871
      %v924 = vunpack.c.l.b16 %v872
      %v925 = vunpack.c.h.b16 %v872
      %v926 = vunpack.c.l.b16 %v873
      %v927 = vunpack.c.h.b16 %v873
      %v928 = vunpack.c.l.b16 %v874
      %v929 = vunpack.c.h.b16 %v874
      %v930 = vunpack.c.l.b16 %v875
      %v931 = vunpack.c.h.b16 %v875
      %v932 = vunpack.c.l.b16 %v876
      %v933 = vunpack.c.h.b16 %v876
      %v934 = vunpack.c.l.b16 %v877
      %v935 = vunpack.c.h.b16 %v877
      %v936 = vunpack.c.l.b16 %v878
      %v937 = vunpack.c.h.b16 %v878
      %v938 = vunpack.c.l.b16 %v879
      %v939 = vunpack.c.h.b16 %v879
      %v940 = vpack.c.b16 %v910, %v908
      %v941 = vpack.c.b16 %v911, %v909
      %v942 = vpack.c.b16 %v914, %v912
      %v943 = vpack.c.b16 %v915, %v913
      %v944 = vpack.c.b16 %v918, %v916
      %v945 = vpack.c.b16 %v919, %v917
      %v946 = vpack.c.b16 %v922, %v920
      %v947 = vpack.c.b16 %v923, %v921
      %v948 = vpack.c.b16 %v926, %v924
      %v949 = vpack.c.b16 %v927, %v925
      %v950 = vpack.c.b16 %v930, %v928
      %v951 = vpack.c.b16 %v931, %v929
      %v952 = vpack.c.b16 %v934, %v932
      %v953 = vpack.c.b16 %v935, %v933
      %v954 = vpack.c.b16 %v938, %v936
      %v955 = vpack.c.b16 %v939, %v937
      %972 = vmatprep.subr.bf16.mxu0 %v955
      %973 = vmatpush1.bf16.msra.mxu0 %v954
      %974 = vmatprep.subr.bf16.mxu0 %v953
      %975 = vmatpush1.bf16.msra.mxu0 %v952
      %976 = vmatprep.subr.bf16.mxu0 %v951
      %977 = vmatpush1.bf16.msra.mxu0 %v950
      %978 = vmatprep.subr.bf16.mxu0 %v949
      %979 = vmatpush1.bf16.msra.mxu0 %v948
      %980 = vmatprep.subr.bf16.mxu0 %v947
      %981 = vmatpush1.bf16.msra.mxu0 %v946
      %982 = vmatprep.subr.bf16.mxu0 %v945
      %983 = vmatpush1.bf16.msra.mxu0 %v944
      %984 = vmatprep.subr.bf16.mxu0 %v943
      %985 = vmatpush1.bf16.msra.mxu0 %v942
      %986 = vmatprep.subr.bf16.mxu0 %v941
      %987 = vmatpush1.bf16.msra.mxu0 %v940
      %988 = vmatprep.subr.bf16.mxu0 0
      %989 = vmatpush2.bf16.msra.mxu0 0
      %990 = vmatprep.subr.bf16.mxu0 0
      %991 = vmatpush2.bf16.msra.mxu0 0
      %992 = vmatprep.subr.bf16.mxu0 0
      %993 = vmatpush2.bf16.msra.mxu0 0
      %994 = vmatprep.subr.bf16.mxu0 0
      %995 = vmatpush2.bf16.msra.mxu0 0
      %996 = vmatprep.subr.bf16.mxu0 0
      %997 = vmatpush2.bf16.msra.mxu0 0
      %998 = vmatprep.subr.bf16.mxu0 0
      %999 = vmatpush2.bf16.msra.mxu0 0
      %1000 = vmatprep.subr.bf16.mxu0 0
      %1001 = vmatpush2.bf16.msra.mxu0 0
      %1002 = vmatprep.subr.bf16.mxu0 0
      %1003 = vmatpush2.bf16.msra.mxu0 0
      %1004 = vmatprep.mubr.bf16.mxu0 0
      %1005 = vmatmul.mubr.bf16.gmra.mxu0 %v886
      %v1006 = vpop.f32.mrf.mxu0
      %v1007 = vadd.f32 0.0, %v1006
      %v1008 = vpop.f32.mrf.mxu0
      %v1009 = vadd.f32 0.0, %v1008
      %v1010 = vpop.f32.mrf.mxu0
      %v1011 = vadd.f32 0.0, %v1010
      %v1012 = vpop.f32.mrf.mxu0
      %v1013 = vadd.f32 0.0, %v1012
      %1014 = vmatprep.mubr.bf16.mxu0 0
      %1015 = vmatmul.mubr.bf16.gmra.mxu0 %v888
      %v1016 = vpop.f32.mrf.mxu0
      %v1017 = vadd.f32 0.0, %v1016
      %v1018 = vpop.f32.mrf.mxu0
      %v1019 = vadd.f32 0.0, %v1018
      %v1020 = vpop.f32.mrf.mxu0
      %v1021 = vadd.f32 0.0, %v1020
      %v1022 = vpop.f32.mrf.mxu0
      %v1023 = vadd.f32 0.0, %v1022
      %1024 = vmatprep.mubr.bf16.mxu0 0
      %1025 = vmatmul.mubr.bf16.gmra.mxu0 %v887
      %v1026 = vpop.f32.mrf.mxu0
      %v1027 = vadd.f32 0.0, %v1026
      %v1028 = vpop.f32.mrf.mxu0
      %v1029 = vadd.f32 0.0, %v1028
      %v1030 = vpop.f32.mrf.mxu0
      %v1031 = vpop.f32.mrf.mxu0
      %1032 = vdwg.mxu0
      %v1033 = vadd.f32 %v837, %v1007
      %v1034 = vadd.f32 %v839, %v1009
      %v1035 = vadd.f32 %v841, %v1011
      %v1036 = vadd.f32 %v843, %v1013
      %v1037 = vadd.f32 %v847, %v1017
      %v1038 = vadd.f32 %v849, %v1019
      %v1039 = vadd.f32 %v851, %v1021
      %v1040 = vadd.f32 %v853, %v1023
      %v1041 = vadd.f32 %v857, %v1027
      %v1042 = vadd.f32 %v859, %v1029
      %v1043 = vld [vmem:[%s4] sm:$0x3]
      %v1045 = vlaneseq
      %v1046 = vshrl.u32 %v1045, 7
      %v1047 = vsub.s32 0, %v1046
      %v1048 = vrot.slane %v1043, %v1047
      %v1049 = vlaneseq
      %v1050 = vshrl.u32 %v1049, 7
      %v1051 = vsub.s32 1, %v1050
      %v1052 = vrot.slane %v1043, %v1051
      %v1055 = vadd.f32 %v1033, %v1048
      %v1056 = vadd.f32 %v1034, %v1052
      %v1057 = vadd.f32 %v1035, %v1048
      %v1058 = vadd.f32 %v1036, %v1052
      %v1059 = vadd.f32 %v1037, %v1048
      %v1060 = vadd.f32 %v1038, %v1052
      %v1061 = vadd.f32 %v1039, %v1048
      %v1062 = vadd.f32 %v1040, %v1052
      %v1063 = vadd.f32 %v1041, %v1048
      %v1064 = vadd.f32 %v1042, %v1052
      %v1065 = vmax.f32 %v1055, 0.0
      %v1066 = vmax.f32 %v1056, 0.0
      %v1067 = vmax.f32 %v1057, 0.0
      %v1068 = vmax.f32 %v1058, 0.0
      %v1069 = vmax.f32 %v1059, 0.0
      %v1070 = vmax.f32 %v1060, 0.0
      %v1071 = vmax.f32 %v1061, 0.0
      %v1072 = vmax.f32 %v1062, 0.0
      %v1073 = vmax.f32 %v1063, 0.0
      %v1074 = vmax.f32 %v1064, 0.0
      %s1075 = smul.u32 %s23, 32
      %s1076 = ssub.s32 %s1075, 1
      %v1077 = vlaneseq
      %v1078 = vshrl.u32 %v1077, 7
      %v1079 = vadd.s32 %v1078, 8
      %v1080 = vadd.s32 %v1078, 16
      %v1081 = vadd.s32 %v1078, 24
      %v1082 = vadd.s32 %v1078, 32
      %v1083 = vstv %s1076
      %v1084 = vadd.s32 %v1083, %v1078
      %v1085 = vadd.s32 %v1083, %v1079
      %v1086 = vadd.s32 %v1083, %v1080
      %v1087 = vadd.s32 %v1083, %v1081
      %v1088 = vadd.s32 %v1083, %v1082
      %vm1089 = vcmp.ge.s32.totalorder %v1084, 0
      %vm1090 = vcmp.ge.s32.totalorder %v1085, 0
      %vm1091 = vcmp.ge.s32.totalorder %v1086, 0
      %vm1092 = vcmp.ge.s32.totalorder %v1087, 0
      %vm1093 = vcmp.ge.s32.totalorder %v1088, 0
      %vm1094 = vcmp.lt.s32.totalorder %v1084, 32
      %vm1095 = vcmp.lt.s32.totalorder %v1085, 32
      %vm1096 = vcmp.lt.s32.totalorder %v1086, 32
      %vm1097 = vcmp.lt.s32.totalorder %v1087, 32
      %vm1098 = vcmp.lt.s32.totalorder %v1088, 32
      %vm1099 = vmand %vm1089, %vm1094
      %vm1100 = vmand %vm1090, %vm1095
      %vm1101 = vmand %vm1091, %vm1096
      %vm1102 = vmand %vm1092, %vm1097
      %vm1103 = vmand %vm1093, %vm1098
      %v1104 = vsel %vm1099, 1, 0
      %v1105 = vsel %vm1100, 1, 0
      %v1106 = vsel %vm1101, 1, 0
      %v1107 = vsel %vm1102, 1, 0
      %v1108 = vsel %vm1103, 1, 0
      %vm1109 = vcmp.eq.s32.totalorder %v1104, 1
      %vm1110 = vcmp.eq.s32.totalorder %v1105, 1
      %vm1111 = vcmp.eq.s32.totalorder %v1106, 1
      %vm1112 = vcmp.eq.s32.totalorder %v1107, 1
      %vm1113 = vcmp.eq.s32.totalorder %v1108, 1
      %v1114 = vsel %vm1109, %v1065, 0.0
      %v1115 = vsel %vm1109, %v1066, 0.0
      %v1116 = vsel %vm1110, %v1067, 0.0
      %v1117 = vsel %vm1110, %v1068, 0.0
      %v1118 = vsel %vm1111, %v1069, 0.0
      %v1119 = vsel %vm1111, %v1070, 0.0
      %v1120 = vsel %vm1112, %v1071, 0.0
      %v1121 = vsel %vm1112, %v1072, 0.0
      %v1122 = vsel %vm1113, %v1073, 0.0
      %v1123 = vsel %vm1113, %v1074, 0.0
      %v1124 = vpack.c.bf16 %v1116, %v1114
      %v1125 = vpack.c.bf16 %v1117, %v1115
      %v1126 = vpack.c.bf16 %v1120, %v1118
      %v1127 = vpack.c.bf16 %v1121, %v1119
      %v1128 = vpack.c.bf16 %v1122, %v1122
      %v1129 = vpack.c.bf16 %v1123, %v1123
      %v1130 = vld [vmem:[%s5] sm:$0xff]
      %v1131 = vld [vmem:[%s5 + $0x8] sm:$0xff]
      %v1132 = vld [vmem:[%s5 + $0x10] sm:$0xff]
      %v1133 = vld [vmem:[%s5 + $0x18] sm:$0xff]
      %v1134 = vld [vmem:[%s5 + $0x20] sm:$0xff]
      %v1135 = vld [vmem:[%s5 + $0x28] sm:$0xff]
      %v1136 = vld [vmem:[%s5 + $0x30] sm:$0xff]
      %v1137 = vld [vmem:[%s5 + $0x38] sm:$0xff]
      %v1138 = vld [vmem:[%s5 + $0x40] sm:$0xff]
      %v1139 = vld [vmem:[%s5 + $0x48] sm:$0xff]
      %v1140 = vld [vmem:[%s5 + $0x50] sm:$0xff]
      %v1141 = vld [vmem:[%s5 + $0x58] sm:$0xff]
      %v1142 = vld [vmem:[%s5 + $0x60] sm:$0xff]
      %v1143 = vld [vmem:[%s5 + $0x68] sm:$0xff]
      %v1144 = vld [vmem:[%s5 + $0x70] sm:$0xff]
      %v1145 = vld [vmem:[%s5 + $0x78] sm:$0xff]
      %v1146 = vld [vmem:[%s5 + $0x80] sm:$0xff]
      %v1147 = vld [vmem:[%s5 + $0x88] sm:$0xff]
      %v1148 = vld [vmem:[%s5 + $0x90] sm:$0xff]
      %v1149 = vld [vmem:[%s5 + $0x98] sm:$0xff]
      %v1150 = vld [vmem:[%s5 + $0xa0] sm:$0xff]
      %v1151 = vld [vmem:[%s5 + $0xa8] sm:$0xff]
      %v1152 = vld [vmem:[%s5 + $0xb0] sm:$0xff]
      %v1153 = vld [vmem:[%s5 + $0xb8] sm:$0xff]
      %v1154 = vld [vmem:[%s5 + $0xc0] sm:$0xff]
      %v1155 = vld [vmem:[%s5 + $0xc8] sm:$0xff]
      %v1156 = vld [vmem:[%s5 + $0xd0] sm:$0xff]
      %v1157 = vld [vmem:[%s5 + $0xd8] sm:$0xff]
      %v1158 = vld [vmem:[%s5 + $0xe0] sm:$0xff]
      %v1159 = vld [vmem:[%s5 + $0xe8] sm:$0xff]
      %v1160 = vld [vmem:[%s5 + $0xf0] sm:$0xff]
      %v1161 = vld [vmem:[%s5 + $0xf8] sm:$0xff]
      %s1162 = scalar_lea.vmem %s5, 256
      %v1163 = vld [vmem:[%s1162] sm:$0xff]
      %v1164 = vld [vmem:[%s1162 + $0x8] sm:$0xff]
      %v1165 = vld [vmem:[%s1162 + $0x10] sm:$0xff]
      %v1166 = vld [vmem:[%s1162 + $0x18] sm:$0xff]
      %v1167 = vld [vmem:[%s1162 + $0x20] sm:$0xff]
      %v1168 = vld [vmem:[%s1162 + $0x28] sm:$0xff]
      %v1169 = vld [vmem:[%s1162 + $0x30] sm:$0xff]
      %v1170 = vld [vmem:[%s1162 + $0x38] sm:$0xff]
      %v1171 = vld [vmem:[%s1162 + $0x40] sm:$0xff]
      %v1172 = vld [vmem:[%s1162 + $0x48] sm:$0xff]
      %v1173 = vld [vmem:[%s1162 + $0x50] sm:$0xff]
      %v1174 = vld [vmem:[%s1162 + $0x58] sm:$0xff]
      %v1175 = vld [vmem:[%s1162 + $0x60] sm:$0xff]
      %v1176 = vld [vmem:[%s1162 + $0x68] sm:$0xff]
      %v1177 = vld [vmem:[%s1162 + $0x70] sm:$0xff]
      %v1178 = vld [vmem:[%s1162 + $0x78] sm:$0xff]
      %v1179 = vld [vmem:[%s1162 + $0x80] sm:$0xff]
      %v1180 = vld [vmem:[%s1162 + $0x88] sm:$0xff]
      %v1181 = vld [vmem:[%s1162 + $0x90] sm:$0xff]
      %v1182 = vld [vmem:[%s1162 + $0x98] sm:$0xff]
      %v1183 = vld [vmem:[%s1162 + $0xa0] sm:$0xff]
      %v1184 = vld [vmem:[%s1162 + $0xa8] sm:$0xff]
      %v1185 = vld [vmem:[%s1162 + $0xb0] sm:$0xff]
      %v1186 = vld [vmem:[%s1162 + $0xb8] sm:$0xff]
      %v1187 = vld [vmem:[%s1162 + $0xc0] sm:$0xff]
      %v1188 = vld [vmem:[%s1162 + $0xc8] sm:$0xff]
      %v1189 = vld [vmem:[%s1162 + $0xd0] sm:$0xff]
      %v1190 = vld [vmem:[%s1162 + $0xd8] sm:$0xff]
      %v1191 = vld [vmem:[%s1162 + $0xe0] sm:$0xff]
      %v1192 = vld [vmem:[%s1162 + $0xe8] sm:$0xff]
      %v1193 = vld [vmem:[%s1162 + $0xf0] sm:$0xff]
      %v1194 = vld [vmem:[%s1162 + $0xf8] sm:$0xff]
      %v1196 = vshrl.u32 %v1124, 16
      %v1198 = vshll.u32 %v1124, 16
      %v1200 = vrot.slane %v1198, 1
      %v1201 = vor.u32 %v1196, %v1200
      %v1203 = vshll.u32 %v1126, 16
      %v1205 = vrot.slane %v1203, 1
      %v1206 = vsel %vm554, %v1201, %v1205
      %v1208 = vshrl.u32 %v1125, 16
      %v1210 = vshll.u32 %v1125, 16
      %v1212 = vrot.slane %v1210, 1
      %v1213 = vor.u32 %v1208, %v1212
      %v1215 = vshll.u32 %v1127, 16
      %v1217 = vrot.slane %v1215, 1
      %v1218 = vsel %vm554, %v1213, %v1217
      %v1219 = vshrl.u32 %v1126, 16
      %v1221 = vor.u32 %v1219, %v1205
      %v1223 = vshll.u32 %v1128, 16
      %v1225 = vrot.slane %v1223, 1
      %v1226 = vsel %vm554, %v1221, %v1225
      %v1227 = vshrl.u32 %v1127, 16
      %v1229 = vor.u32 %v1227, %v1217
      %v1231 = vshll.u32 %v1129, 16
      %v1233 = vrot.slane %v1231, 1
      %v1234 = vsel %vm554, %v1229, %v1233
      %v1271 = vunpack.c.l.b16 %v1163
      %v1272 = vunpack.c.h.b16 %v1163
      %v1273 = vunpack.c.l.b16 %v1164
      %v1274 = vunpack.c.h.b16 %v1164
      %v1275 = vunpack.c.l.b16 %v1165
      %v1276 = vunpack.c.h.b16 %v1165
      %v1277 = vunpack.c.l.b16 %v1166
      %v1278 = vunpack.c.h.b16 %v1166
      %v1279 = vunpack.c.l.b16 %v1167
      %v1280 = vunpack.c.h.b16 %v1167
      %v1281 = vunpack.c.l.b16 %v1168
      %v1282 = vunpack.c.h.b16 %v1168
      %v1283 = vunpack.c.l.b16 %v1169
      %v1284 = vunpack.c.h.b16 %v1169
      %v1285 = vunpack.c.l.b16 %v1170
      %v1286 = vunpack.c.h.b16 %v1170
      %v1287 = vunpack.c.l.b16 %v1171
      %v1288 = vunpack.c.h.b16 %v1171
      %v1289 = vunpack.c.l.b16 %v1172
      %v1290 = vunpack.c.h.b16 %v1172
      %v1291 = vunpack.c.l.b16 %v1173
      %v1292 = vunpack.c.h.b16 %v1173
      %v1293 = vunpack.c.l.b16 %v1174
      %v1294 = vunpack.c.h.b16 %v1174
      %v1295 = vunpack.c.l.b16 %v1175
      %v1296 = vunpack.c.h.b16 %v1175
      %v1297 = vunpack.c.l.b16 %v1176
      %v1298 = vunpack.c.h.b16 %v1176
      %v1299 = vunpack.c.l.b16 %v1177
      %v1300 = vunpack.c.h.b16 %v1177
      %v1301 = vunpack.c.l.b16 %v1178
      %v1302 = vunpack.c.h.b16 %v1178
      %v1303 = vunpack.c.l.b16 %v1179
      %v1304 = vunpack.c.h.b16 %v1179
      %v1305 = vunpack.c.l.b16 %v1180
      %v1306 = vunpack.c.h.b16 %v1180
      %v1307 = vunpack.c.l.b16 %v1181
      %v1308 = vunpack.c.h.b16 %v1181
      %v1309 = vunpack.c.l.b16 %v1182
      %v1310 = vunpack.c.h.b16 %v1182
      %v1311 = vunpack.c.l.b16 %v1183
      %v1312 = vunpack.c.h.b16 %v1183
      %v1313 = vunpack.c.l.b16 %v1184
      %v1314 = vunpack.c.h.b16 %v1184
      %v1315 = vunpack.c.l.b16 %v1185
      %v1316 = vunpack.c.h.b16 %v1185
      %v1317 = vunpack.c.l.b16 %v1186
      %v1318 = vunpack.c.h.b16 %v1186
      %v1319 = vunpack.c.l.b16 %v1187
      %v1320 = vunpack.c.h.b16 %v1187
      %v1321 = vunpack.c.l.b16 %v1188
      %v1322 = vunpack.c.h.b16 %v1188
      %v1323 = vunpack.c.l.b16 %v1189
      %v1324 = vunpack.c.h.b16 %v1189
      %v1325 = vunpack.c.l.b16 %v1190
      %v1326 = vunpack.c.h.b16 %v1190
      %v1327 = vunpack.c.l.b16 %v1191
      %v1328 = vunpack.c.h.b16 %v1191
      %v1329 = vunpack.c.l.b16 %v1192
      %v1330 = vunpack.c.h.b16 %v1192
      %v1331 = vunpack.c.l.b16 %v1193
      %v1332 = vunpack.c.h.b16 %v1193
      %v1333 = vunpack.c.l.b16 %v1194
      %v1334 = vunpack.c.h.b16 %v1194
      %v1335 = vpack.c.b16 %v1273, %v1271
      %v1336 = vpack.c.b16 %v1274, %v1272
      %v1337 = vpack.c.b16 %v1277, %v1275
      %v1338 = vpack.c.b16 %v1278, %v1276
      %v1339 = vpack.c.b16 %v1281, %v1279
      %v1340 = vpack.c.b16 %v1282, %v1280
      %v1341 = vpack.c.b16 %v1285, %v1283
      %v1342 = vpack.c.b16 %v1286, %v1284
      %v1343 = vpack.c.b16 %v1289, %v1287
      %v1344 = vpack.c.b16 %v1290, %v1288
      %v1345 = vpack.c.b16 %v1293, %v1291
      %v1346 = vpack.c.b16 %v1294, %v1292
      %v1347 = vpack.c.b16 %v1297, %v1295
      %v1348 = vpack.c.b16 %v1298, %v1296
      %v1349 = vpack.c.b16 %v1301, %v1299
      %v1350 = vpack.c.b16 %v1302, %v1300
      %v1351 = vpack.c.b16 %v1305, %v1303
      %v1352 = vpack.c.b16 %v1306, %v1304
      %v1353 = vpack.c.b16 %v1309, %v1307
      %v1354 = vpack.c.b16 %v1310, %v1308
      %v1355 = vpack.c.b16 %v1313, %v1311
      %v1356 = vpack.c.b16 %v1314, %v1312
      %v1357 = vpack.c.b16 %v1317, %v1315
      %v1358 = vpack.c.b16 %v1318, %v1316
      %v1359 = vpack.c.b16 %v1321, %v1319
      %v1360 = vpack.c.b16 %v1322, %v1320
      %v1361 = vpack.c.b16 %v1325, %v1323
      %v1362 = vpack.c.b16 %v1326, %v1324
      %v1363 = vpack.c.b16 %v1329, %v1327
      %v1364 = vpack.c.b16 %v1330, %v1328
      %v1365 = vpack.c.b16 %v1333, %v1331
      %v1366 = vpack.c.b16 %v1334, %v1332
      %1399 = vmatprep.subr.bf16.mxu0 %v1350
      %1400 = vmatpush1.bf16.msra.mxu0 %v1349
      %1401 = vmatprep.subr.bf16.mxu0 %v1348
      %1402 = vmatpush1.bf16.msra.mxu0 %v1347
      %1403 = vmatprep.subr.bf16.mxu0 %v1346
      %1404 = vmatpush1.bf16.msra.mxu0 %v1345
      %1405 = vmatprep.subr.bf16.mxu0 %v1344
      %1406 = vmatpush1.bf16.msra.mxu0 %v1343
      %1407 = vmatprep.subr.bf16.mxu0 %v1342
      %1408 = vmatpush1.bf16.msra.mxu0 %v1341
      %1409 = vmatprep.subr.bf16.mxu0 %v1340
      %1410 = vmatpush1.bf16.msra.mxu0 %v1339
      %1411 = vmatprep.subr.bf16.mxu0 %v1338
      %1412 = vmatpush1.bf16.msra.mxu0 %v1337
      %1413 = vmatprep.subr.bf16.mxu0 %v1336
      %1414 = vmatpush1.bf16.msra.mxu0 %v1335
      %1415 = vmatprep.subr.bf16.mxu0 %v1366
      %1416 = vmatpush2.bf16.msra.mxu0 %v1365
      %1417 = vmatprep.subr.bf16.mxu0 %v1364
      %1418 = vmatpush2.bf16.msra.mxu0 %v1363
      %1419 = vmatprep.subr.bf16.mxu0 %v1362
      %1420 = vmatpush2.bf16.msra.mxu0 %v1361
      %1421 = vmatprep.subr.bf16.mxu0 %v1360
      %1422 = vmatpush2.bf16.msra.mxu0 %v1359
      %1423 = vmatprep.subr.bf16.mxu0 %v1358
      %1424 = vmatpush2.bf16.msra.mxu0 %v1357
      %1425 = vmatprep.subr.bf16.mxu0 %v1356
      %1426 = vmatpush2.bf16.msra.mxu0 %v1355
      %1427 = vmatprep.subr.bf16.mxu0 %v1354
      %1428 = vmatpush2.bf16.msra.mxu0 %v1353
      %1429 = vmatprep.subr.bf16.mxu0 %v1352
      %1430 = vmatpush2.bf16.msra.mxu0 %v1351
      %1431 = vmatprep.mubr.bf16.mxu0 %v1218
      %1432 = vmatmul.mubr.bf16.gmra.mxu0 %v1206
      %v1433 = vpop.f32.mrf.mxu0
      %v1434 = vadd.f32 0.0, %v1433
      %v1435 = vpop.f32.mrf.mxu0
      %v1436 = vadd.f32 0.0, %v1435
      %v1437 = vpop.f32.mrf.mxu0
      %v1438 = vadd.f32 0.0, %v1437
      %v1439 = vpop.f32.mrf.mxu0
      %v1440 = vadd.f32 0.0, %v1439
      %1441 = vmatprep.mubr.bf16.mxu0 %v1234
      %1442 = vmatmul.mubr.bf16.gmra.mxu0 %v1226
      %v1443 = vpop.f32.mrf.mxu0
      %v1444 = vadd.f32 0.0, %v1443
      %v1445 = vpop.f32.mrf.mxu0
      %v1446 = vadd.f32 0.0, %v1445
      %v1447 = vpop.f32.mrf.mxu0
      %v1448 = vadd.f32 0.0, %v1447
      %v1449 = vpop.f32.mrf.mxu0
      %v1450 = vadd.f32 0.0, %v1449
      %1451 = vdwg.mxu0
      %v1484 = vunpack.c.l.b16 %v1130
      %v1485 = vunpack.c.h.b16 %v1130
      %v1486 = vunpack.c.l.b16 %v1131
      %v1487 = vunpack.c.h.b16 %v1131
      %v1488 = vunpack.c.l.b16 %v1132
      %v1489 = vunpack.c.h.b16 %v1132
      %v1490 = vunpack.c.l.b16 %v1133
      %v1491 = vunpack.c.h.b16 %v1133
      %v1492 = vunpack.c.l.b16 %v1134
      %v1493 = vunpack.c.h.b16 %v1134
      %v1494 = vunpack.c.l.b16 %v1135
      %v1495 = vunpack.c.h.b16 %v1135
      %v1496 = vunpack.c.l.b16 %v1136
      %v1497 = vunpack.c.h.b16 %v1136
      %v1498 = vunpack.c.l.b16 %v1137
      %v1499 = vunpack.c.h.b16 %v1137
      %v1500 = vunpack.c.l.b16 %v1138
      %v1501 = vunpack.c.h.b16 %v1138
      %v1502 = vunpack.c.l.b16 %v1139
      %v1503 = vunpack.c.h.b16 %v1139
      %v1504 = vunpack.c.l.b16 %v1140
      %v1505 = vunpack.c.h.b16 %v1140
      %v1506 = vunpack.c.l.b16 %v1141
      %v1507 = vunpack.c.h.b16 %v1141
      %v1508 = vunpack.c.l.b16 %v1142
      %v1509 = vunpack.c.h.b16 %v1142
      %v1510 = vunpack.c.l.b16 %v1143
      %v1511 = vunpack.c.h.b16 %v1143
      %v1512 = vunpack.c.l.b16 %v1144
      %v1513 = vunpack.c.h.b16 %v1144
      %v1514 = vunpack.c.l.b16 %v1145
      %v1515 = vunpack.c.h.b16 %v1145
      %v1516 = vunpack.c.l.b16 %v1146
      %v1517 = vunpack.c.h.b16 %v1146
      %v1518 = vunpack.c.l.b16 %v1147
      %v1519 = vunpack.c.h.b16 %v1147
      %v1520 = vunpack.c.l.b16 %v1148
      %v1521 = vunpack.c.h.b16 %v1148
      %v1522 = vunpack.c.l.b16 %v1149
      %v1523 = vunpack.c.h.b16 %v1149
      %v1524 = vunpack.c.l.b16 %v1150
      %v1525 = vunpack.c.h.b16 %v1150
      %v1526 = vunpack.c.l.b16 %v1151
      %v1527 = vunpack.c.h.b16 %v1151
      %v1528 = vunpack.c.l.b16 %v1152
      %v1529 = vunpack.c.h.b16 %v1152
      %v1530 = vunpack.c.l.b16 %v1153
      %v1531 = vunpack.c.h.b16 %v1153
      %v1532 = vunpack.c.l.b16 %v1154
      %v1533 = vunpack.c.h.b16 %v1154
      %v1534 = vunpack.c.l.b16 %v1155
      %v1535 = vunpack.c.h.b16 %v1155
      %v1536 = vunpack.c.l.b16 %v1156
      %v1537 = vunpack.c.h.b16 %v1156
      %v1538 = vunpack.c.l.b16 %v1157
      %v1539 = vunpack.c.h.b16 %v1157
      %v1540 = vunpack.c.l.b16 %v1158
      %v1541 = vunpack.c.h.b16 %v1158
      %v1542 = vunpack.c.l.b16 %v1159
      %v1543 = vunpack.c.h.b16 %v1159
      %v1544 = vunpack.c.l.b16 %v1160
      %v1545 = vunpack.c.h.b16 %v1160
      %v1546 = vunpack.c.l.b16 %v1161
      %v1547 = vunpack.c.h.b16 %v1161
      %v1548 = vpack.c.b16 %v1486, %v1484
      %v1549 = vpack.c.b16 %v1487, %v1485
      %v1550 = vpack.c.b16 %v1490, %v1488
      %v1551 = vpack.c.b16 %v1491, %v1489
      %v1552 = vpack.c.b16 %v1494, %v1492
      %v1553 = vpack.c.b16 %v1495, %v1493
      %v1554 = vpack.c.b16 %v1498, %v1496
      %v1555 = vpack.c.b16 %v1499, %v1497
      %v1556 = vpack.c.b16 %v1502, %v1500
      %v1557 = vpack.c.b16 %v1503, %v1501
      %v1558 = vpack.c.b16 %v1506, %v1504
      %v1559 = vpack.c.b16 %v1507, %v1505
      %v1560 = vpack.c.b16 %v1510, %v1508
      %v1561 = vpack.c.b16 %v1511, %v1509
      %v1562 = vpack.c.b16 %v1514, %v1512
      %v1563 = vpack.c.b16 %v1515, %v1513
      %v1564 = vpack.c.b16 %v1518, %v1516
      %v1565 = vpack.c.b16 %v1519, %v1517
      %v1566 = vpack.c.b16 %v1522, %v1520
      %v1567 = vpack.c.b16 %v1523, %v1521
      %v1568 = vpack.c.b16 %v1526, %v1524
      %v1569 = vpack.c.b16 %v1527, %v1525
      %v1570 = vpack.c.b16 %v1530, %v1528
      %v1571 = vpack.c.b16 %v1531, %v1529
      %v1572 = vpack.c.b16 %v1534, %v1532
      %v1573 = vpack.c.b16 %v1535, %v1533
      %v1574 = vpack.c.b16 %v1538, %v1536
      %v1575 = vpack.c.b16 %v1539, %v1537
      %v1576 = vpack.c.b16 %v1542, %v1540
      %v1577 = vpack.c.b16 %v1543, %v1541
      %v1578 = vpack.c.b16 %v1546, %v1544
      %v1579 = vpack.c.b16 %v1547, %v1545
      %1612 = vmatprep.subr.bf16.mxu0 %v1563
      %1613 = vmatpush1.bf16.msra.mxu0 %v1562
      %1614 = vmatprep.subr.bf16.mxu0 %v1561
      %1615 = vmatpush1.bf16.msra.mxu0 %v1560
      %1616 = vmatprep.subr.bf16.mxu0 %v1559
      %1617 = vmatpush1.bf16.msra.mxu0 %v1558
      %1618 = vmatprep.subr.bf16.mxu0 %v1557
      %1619 = vmatpush1.bf16.msra.mxu0 %v1556
      %1620 = vmatprep.subr.bf16.mxu0 %v1555
      %1621 = vmatpush1.bf16.msra.mxu0 %v1554
      %1622 = vmatprep.subr.bf16.mxu0 %v1553
      %1623 = vmatpush1.bf16.msra.mxu0 %v1552
      %1624 = vmatprep.subr.bf16.mxu0 %v1551
      %1625 = vmatpush1.bf16.msra.mxu0 %v1550
      %1626 = vmatprep.subr.bf16.mxu0 %v1549
      %1627 = vmatpush1.bf16.msra.mxu0 %v1548
      %1628 = vmatprep.subr.bf16.mxu0 %v1579
      %1629 = vmatpush2.bf16.msra.mxu0 %v1578
      %1630 = vmatprep.subr.bf16.mxu0 %v1577
      %1631 = vmatpush2.bf16.msra.mxu0 %v1576
      %1632 = vmatprep.subr.bf16.mxu0 %v1575
      %1633 = vmatpush2.bf16.msra.mxu0 %v1574
      %1634 = vmatprep.subr.bf16.mxu0 %v1573
      %1635 = vmatpush2.bf16.msra.mxu0 %v1572
      %1636 = vmatprep.subr.bf16.mxu0 %v1571
      %1637 = vmatpush2.bf16.msra.mxu0 %v1570
      %1638 = vmatprep.subr.bf16.mxu0 %v1569
      %1639 = vmatpush2.bf16.msra.mxu0 %v1568
      %1640 = vmatprep.subr.bf16.mxu0 %v1567
      %1641 = vmatpush2.bf16.msra.mxu0 %v1566
      %1642 = vmatprep.subr.bf16.mxu0 %v1565
      %1643 = vmatpush2.bf16.msra.mxu0 %v1564
      %1644 = vmatprep.mubr.bf16.mxu0 %v1125
      %1645 = vmatmul.mubr.bf16.gmra.mxu0 %v1124
      %v1646 = vpop.f32.mrf.mxu0
      %v1647 = vadd.f32 %v1434, %v1646
      %v1648 = vpop.f32.mrf.mxu0
      %v1649 = vadd.f32 %v1436, %v1648
      %v1650 = vpop.f32.mrf.mxu0
      %v1651 = vadd.f32 %v1438, %v1650
      %v1652 = vpop.f32.mrf.mxu0
      %v1653 = vadd.f32 %v1440, %v1652
      %1654 = vmatprep.mubr.bf16.mxu0 %v1127
      %1655 = vmatmul.mubr.bf16.gmra.mxu0 %v1126
      %v1656 = vpop.f32.mrf.mxu0
      %v1657 = vadd.f32 %v1444, %v1656
      %v1658 = vpop.f32.mrf.mxu0
      %v1659 = vadd.f32 %v1446, %v1658
      %v1660 = vpop.f32.mrf.mxu0
      %v1661 = vadd.f32 %v1448, %v1660
      %v1662 = vpop.f32.mrf.mxu0
      %v1663 = vadd.f32 %v1450, %v1662
      %1664 = vdwg.mxu0
      %s1665 = scalar_lea.vmem %s5, 512
      %v1666 = vld [vmem:[%s1665] sm:$0xff]
      %v1667 = vld [vmem:[%s1665 + $0x8] sm:$0xff]
      %v1668 = vld [vmem:[%s1665 + $0x10] sm:$0xff]
      %v1669 = vld [vmem:[%s1665 + $0x18] sm:$0xff]
      %v1670 = vld [vmem:[%s1665 + $0x20] sm:$0xff]
      %v1671 = vld [vmem:[%s1665 + $0x28] sm:$0xff]
      %v1672 = vld [vmem:[%s1665 + $0x30] sm:$0xff]
      %v1673 = vld [vmem:[%s1665 + $0x38] sm:$0xff]
      %v1674 = vld [vmem:[%s1665 + $0x40] sm:$0xff]
      %v1675 = vld [vmem:[%s1665 + $0x48] sm:$0xff]
      %v1676 = vld [vmem:[%s1665 + $0x50] sm:$0xff]
      %v1677 = vld [vmem:[%s1665 + $0x58] sm:$0xff]
      %v1678 = vld [vmem:[%s1665 + $0x60] sm:$0xff]
      %v1679 = vld [vmem:[%s1665 + $0x68] sm:$0xff]
      %v1680 = vld [vmem:[%s1665 + $0x70] sm:$0xff]
      %v1681 = vld [vmem:[%s1665 + $0x78] sm:$0xff]
      %v1682 = vld [vmem:[%s1665 + $0x80] sm:$0xff]
      %v1683 = vld [vmem:[%s1665 + $0x88] sm:$0xff]
      %v1684 = vld [vmem:[%s1665 + $0x90] sm:$0xff]
      %v1685 = vld [vmem:[%s1665 + $0x98] sm:$0xff]
      %v1686 = vld [vmem:[%s1665 + $0xa0] sm:$0xff]
      %v1687 = vld [vmem:[%s1665 + $0xa8] sm:$0xff]
      %v1688 = vld [vmem:[%s1665 + $0xb0] sm:$0xff]
      %v1689 = vld [vmem:[%s1665 + $0xb8] sm:$0xff]
      %v1690 = vld [vmem:[%s1665 + $0xc0] sm:$0xff]
      %v1691 = vld [vmem:[%s1665 + $0xc8] sm:$0xff]
      %v1692 = vld [vmem:[%s1665 + $0xd0] sm:$0xff]
      %v1693 = vld [vmem:[%s1665 + $0xd8] sm:$0xff]
      %v1694 = vld [vmem:[%s1665 + $0xe0] sm:$0xff]
      %v1695 = vld [vmem:[%s1665 + $0xe8] sm:$0xff]
      %v1696 = vld [vmem:[%s1665 + $0xf0] sm:$0xff]
      %v1697 = vld [vmem:[%s1665 + $0xf8] sm:$0xff]
      %v1704 = vrot.slane %v1124, 1
      %v1705 = vrot.slane %v1126, 1
      %v1706 = vsel %vm883, %v1704, %v1705
      %v1707 = vrot.slane %v1125, 1
      %v1708 = vrot.slane %v1127, 1
      %v1709 = vsel %vm883, %v1707, %v1708
      %v1710 = vrot.slane %v1128, 1
      %v1711 = vsel %vm883, %v1705, %v1710
      %v1712 = vrot.slane %v1129, 1
      %v1713 = vsel %vm883, %v1708, %v1712
      %v1750 = vunpack.c.l.b16 %v1666
      %v1751 = vunpack.c.h.b16 %v1666
      %v1752 = vunpack.c.l.b16 %v1667
      %v1753 = vunpack.c.h.b16 %v1667
      %v1754 = vunpack.c.l.b16 %v1668
      %v1755 = vunpack.c.h.b16 %v1668
      %v1756 = vunpack.c.l.b16 %v1669
      %v1757 = vunpack.c.h.b16 %v1669
      %v1758 = vunpack.c.l.b16 %v1670
      %v1759 = vunpack.c.h.b16 %v1670
      %v1760 = vunpack.c.l.b16 %v1671
      %v1761 = vunpack.c.h.b16 %v1671
      %v1762 = vunpack.c.l.b16 %v1672
      %v1763 = vunpack.c.h.b16 %v1672
      %v1764 = vunpack.c.l.b16 %v1673
      %v1765 = vunpack.c.h.b16 %v1673
      %v1766 = vunpack.c.l.b16 %v1674
      %v1767 = vunpack.c.h.b16 %v1674
      %v1768 = vunpack.c.l.b16 %v1675
      %v1769 = vunpack.c.h.b16 %v1675
      %v1770 = vunpack.c.l.b16 %v1676
      %v1771 = vunpack.c.h.b16 %v1676
      %v1772 = vunpack.c.l.b16 %v1677
      %v1773 = vunpack.c.h.b16 %v1677
      %v1774 = vunpack.c.l.b16 %v1678
      %v1775 = vunpack.c.h.b16 %v1678
      %v1776 = vunpack.c.l.b16 %v1679
      %v1777 = vunpack.c.h.b16 %v1679
      %v1778 = vunpack.c.l.b16 %v1680
      %v1779 = vunpack.c.h.b16 %v1680
      %v1780 = vunpack.c.l.b16 %v1681
      %v1781 = vunpack.c.h.b16 %v1681
      %v1782 = vunpack.c.l.b16 %v1682
      %v1783 = vunpack.c.h.b16 %v1682
      %v1784 = vunpack.c.l.b16 %v1683
      %v1785 = vunpack.c.h.b16 %v1683
      %v1786 = vunpack.c.l.b16 %v1684
      %v1787 = vunpack.c.h.b16 %v1684
      %v1788 = vunpack.c.l.b16 %v1685
      %v1789 = vunpack.c.h.b16 %v1685
      %v1790 = vunpack.c.l.b16 %v1686
      %v1791 = vunpack.c.h.b16 %v1686
      %v1792 = vunpack.c.l.b16 %v1687
      %v1793 = vunpack.c.h.b16 %v1687
      %v1794 = vunpack.c.l.b16 %v1688
      %v1795 = vunpack.c.h.b16 %v1688
      %v1796 = vunpack.c.l.b16 %v1689
      %v1797 = vunpack.c.h.b16 %v1689
      %v1798 = vunpack.c.l.b16 %v1690
      %v1799 = vunpack.c.h.b16 %v1690
      %v1800 = vunpack.c.l.b16 %v1691
      %v1801 = vunpack.c.h.b16 %v1691
      %v1802 = vunpack.c.l.b16 %v1692
      %v1803 = vunpack.c.h.b16 %v1692
      %v1804 = vunpack.c.l.b16 %v1693
      %v1805 = vunpack.c.h.b16 %v1693
      %v1806 = vunpack.c.l.b16 %v1694
      %v1807 = vunpack.c.h.b16 %v1694
      %v1808 = vunpack.c.l.b16 %v1695
      %v1809 = vunpack.c.h.b16 %v1695
      %v1810 = vunpack.c.l.b16 %v1696
      %v1811 = vunpack.c.h.b16 %v1696
      %v1812 = vunpack.c.l.b16 %v1697
      %v1813 = vunpack.c.h.b16 %v1697
      %v1814 = vpack.c.b16 %v1752, %v1750
      %v1815 = vpack.c.b16 %v1753, %v1751
      %v1816 = vpack.c.b16 %v1756, %v1754
      %v1817 = vpack.c.b16 %v1757, %v1755
      %v1818 = vpack.c.b16 %v1760, %v1758
      %v1819 = vpack.c.b16 %v1761, %v1759
      %v1820 = vpack.c.b16 %v1764, %v1762
      %v1821 = vpack.c.b16 %v1765, %v1763
      %v1822 = vpack.c.b16 %v1768, %v1766
      %v1823 = vpack.c.b16 %v1769, %v1767
      %v1824 = vpack.c.b16 %v1772, %v1770
      %v1825 = vpack.c.b16 %v1773, %v1771
      %v1826 = vpack.c.b16 %v1776, %v1774
      %v1827 = vpack.c.b16 %v1777, %v1775
      %v1828 = vpack.c.b16 %v1780, %v1778
      %v1829 = vpack.c.b16 %v1781, %v1779
      %v1830 = vpack.c.b16 %v1784, %v1782
      %v1831 = vpack.c.b16 %v1785, %v1783
      %v1832 = vpack.c.b16 %v1788, %v1786
      %v1833 = vpack.c.b16 %v1789, %v1787
      %v1834 = vpack.c.b16 %v1792, %v1790
      %v1835 = vpack.c.b16 %v1793, %v1791
      %v1836 = vpack.c.b16 %v1796, %v1794
      %v1837 = vpack.c.b16 %v1797, %v1795
      %v1838 = vpack.c.b16 %v1800, %v1798
      %v1839 = vpack.c.b16 %v1801, %v1799
      %v1840 = vpack.c.b16 %v1804, %v1802
      %v1841 = vpack.c.b16 %v1805, %v1803
      %v1842 = vpack.c.b16 %v1808, %v1806
      %v1843 = vpack.c.b16 %v1809, %v1807
      %v1844 = vpack.c.b16 %v1812, %v1810
      %v1845 = vpack.c.b16 %v1813, %v1811
      %1878 = vmatprep.subr.bf16.mxu0 %v1829
      %1879 = vmatpush1.bf16.msra.mxu0 %v1828
      %1880 = vmatprep.subr.bf16.mxu0 %v1827
      %1881 = vmatpush1.bf16.msra.mxu0 %v1826
      %1882 = vmatprep.subr.bf16.mxu0 %v1825
      %1883 = vmatpush1.bf16.msra.mxu0 %v1824
      %1884 = vmatprep.subr.bf16.mxu0 %v1823
      %1885 = vmatpush1.bf16.msra.mxu0 %v1822
      %1886 = vmatprep.subr.bf16.mxu0 %v1821
      %1887 = vmatpush1.bf16.msra.mxu0 %v1820
      %1888 = vmatprep.subr.bf16.mxu0 %v1819
      %1889 = vmatpush1.bf16.msra.mxu0 %v1818
      %1890 = vmatprep.subr.bf16.mxu0 %v1817
      %1891 = vmatpush1.bf16.msra.mxu0 %v1816
      %1892 = vmatprep.subr.bf16.mxu0 %v1815
      %1893 = vmatpush1.bf16.msra.mxu0 %v1814
      %1894 = vmatprep.subr.bf16.mxu0 %v1845
      %1895 = vmatpush2.bf16.msra.mxu0 %v1844
      %1896 = vmatprep.subr.bf16.mxu0 %v1843
      %1897 = vmatpush2.bf16.msra.mxu0 %v1842
      %1898 = vmatprep.subr.bf16.mxu0 %v1841
      %1899 = vmatpush2.bf16.msra.mxu0 %v1840
      %1900 = vmatprep.subr.bf16.mxu0 %v1839
      %1901 = vmatpush2.bf16.msra.mxu0 %v1838
      %1902 = vmatprep.subr.bf16.mxu0 %v1837
      %1903 = vmatpush2.bf16.msra.mxu0 %v1836
      %1904 = vmatprep.subr.bf16.mxu0 %v1835
      %1905 = vmatpush2.bf16.msra.mxu0 %v1834
      %1906 = vmatprep.subr.bf16.mxu0 %v1833
      %1907 = vmatpush2.bf16.msra.mxu0 %v1832
      %1908 = vmatprep.subr.bf16.mxu0 %v1831
      %1909 = vmatpush2.bf16.msra.mxu0 %v1830
      %1910 = vmatprep.mubr.bf16.mxu0 %v1709
      %1911 = vmatmul.mubr.bf16.gmra.mxu0 %v1706
      %v1912 = vpop.f32.mrf.mxu0
      %v1913 = vadd.f32 0.0, %v1912
      %v1914 = vpop.f32.mrf.mxu0
      %v1915 = vadd.f32 0.0, %v1914
      %v1916 = vpop.f32.mrf.mxu0
      %v1917 = vadd.f32 0.0, %v1916
      %v1918 = vpop.f32.mrf.mxu0
      %v1919 = vadd.f32 0.0, %v1918
      %1920 = vmatprep.mubr.bf16.mxu0 %v1713
      %1921 = vmatmul.mubr.bf16.gmra.mxu0 %v1711
      %v1922 = vpop.f32.mrf.mxu0
      %v1923 = vadd.f32 0.0, %v1922
      %v1924 = vpop.f32.mrf.mxu0
      %v1925 = vadd.f32 0.0, %v1924
      %v1926 = vpop.f32.mrf.mxu0
      %v1927 = vadd.f32 0.0, %v1926
      %v1928 = vpop.f32.mrf.mxu0
      %v1929 = vadd.f32 0.0, %v1928
      %1930 = vdwg.mxu0
      %v1931 = vadd.f32 %v1647, %v1913
      %v1932 = vadd.f32 %v1649, %v1915
      %v1933 = vadd.f32 %v1651, %v1917
      %v1934 = vadd.f32 %v1653, %v1919
      %v1935 = vadd.f32 %v1657, %v1923
      %v1936 = vadd.f32 %v1659, %v1925
      %v1937 = vadd.f32 %v1661, %v1927
      %v1938 = vadd.f32 %v1663, %v1929
      %v1939 = vld [vmem:[%s6] sm:$0x3]
      %v1941 = vlaneseq
      %v1942 = vshrl.u32 %v1941, 7
      %v1943 = vsub.s32 0, %v1942
      %v1944 = vrot.slane %v1939, %v1943
      %v1945 = vlaneseq
      %v1946 = vshrl.u32 %v1945, 7
      %v1947 = vsub.s32 1, %v1946
      %v1948 = vrot.slane %v1939, %v1947
      %v1951 = vadd.f32 %v1931, %v1944
      %v1952 = vadd.f32 %v1932, %v1948
      %v1953 = vadd.f32 %v1933, %v1944
      %v1954 = vadd.f32 %v1934, %v1948
      %v1955 = vadd.f32 %v1935, %v1944
      %v1956 = vadd.f32 %v1936, %v1948
      %v1957 = vadd.f32 %v1937, %v1944
      %v1958 = vadd.f32 %v1938, %v1948
      %v1959 = vmax.f32 %v1951, 0.0
      %v1960 = vmax.f32 %v1952, 0.0
      %v1961 = vmax.f32 %v1953, 0.0
      %v1962 = vmax.f32 %v1954, 0.0
      %v1963 = vmax.f32 %v1955, 0.0
      %v1964 = vmax.f32 %v1956, 0.0
      %v1965 = vmax.f32 %v1957, 0.0
      %v1966 = vmax.f32 %v1958, 0.0
      %v1967 = vpack.c.bf16 %v1961, %v1959
      %v1968 = vpack.c.bf16 %v1962, %v1960
      %v1969 = vpack.c.bf16 %v1965, %v1963
      %v1970 = vpack.c.bf16 %v1966, %v1964
      %v1975 = vunpack.c.l.b16 %v1967
      %v1976 = vunpack.c.l.b16 %v1968
      %v1977 = vunpack.c.h.b16 %v1967
      %v1978 = vunpack.c.h.b16 %v1968
      %v1979 = vunpack.c.l.b16 %v1969
      %v1980 = vunpack.c.l.b16 %v1970
      %v1981 = vunpack.c.h.b16 %v1969
      %v1982 = vunpack.c.h.b16 %v1970
      %v1983 = vpack.c.b16 %v1976, %v1975
      %v1984 = vpack.c.b16 %v1978, %v1977
      %v1985 = vpack.c.b16 %v1980, %v1979
      %v1986 = vpack.c.b16 %v1982, %v1981
      %1991 = vst [vmem:[%s322] sm:$0xff] %v1983
      %1992 = vst [vmem:[%s322 + $0x8] sm:$0xff] %v1984
      %1993 = vst [vmem:[%s322 + $0x10] sm:$0xff] %v1985
      %1994 = vst [vmem:[%s322 + $0x18] sm:$0xff] %v1986
      %s1995 = smul.u32 4, %s23
      %p1996 = scmp.lt.s32.totalorder %s22, 1
      %s1997 = scalar_select %p1996, %s22, 1
      %p1998 = scmp.lt.s32.totalorder %s1995, 3
      %s1999 = scalar_select %p1998, %s1995, 3
      %s2000 = smul.addr %s1999, 2
      %s2001 = smul.addr %s1997, 8
      %s2002 = sadd.s32 %s2000, %s2001
      %s2003 = smul.addr %s2002, 4
      %s2004 = scalar_lea.vmem %s7, %s2003
      // Predicated region
      $region49: #{unet_up_block.1} parent=47 // pred_check
        %p2005 = pneg %p207
      $region50: #{unet_up_block.1} parent=47 // pred_check_branch
        %2007 = sbr.rel (%p2005) target = $region52
      $region51: #{unet_up_block.1} parent=47 // pred_region
        %s2008 = smul.u32 4, %s23
      $region52: #{unet_up_block.1} parent=47 // pred_fallthru
        _
    $region48: #{unet_up_block.1} parent=5 // pred_fallthru
      _
    %p2009 = scmp.le.s32.totalorder 2, %s13
    // Predicated region
    $region53: #{unet_up_block.1} parent=5 // pred_check
      %p2010 = pneg %p2009
    $region54: #{unet_up_block.1} parent=5 // pred_check_branch
      %2012 = sbr.rel (%p2010) target = $region56
    $region55: #{unet_up_block.1} parent=5 // pred_region
      %s2013 = ssub.s32 %s13, 2
      // Predicated region
      $region57: #{unet_up_block.1} parent=55 // pred_check
        %p2014 = pneg %p213
      $region58: #{unet_up_block.1} parent=55 // pred_check_branch
        %2016 = sbr.rel (%p2014) target = $region60
      $region59: #{unet_up_block.1} parent=55 // pred_region
        %s2017 = smul.u32 4, %s25
        %p2018 = scmp.lt.s32.totalorder %s24, 1
        %s2019 = scalar_select %p2018, %s24, 1
        %p2020 = scmp.lt.s32.totalorder %s2017, 3
        %s2021 = scalar_select %p2020, %s2017, 3
        %s2022 = smul.addr %s2021, 2
        %s2023 = smul.addr %s2019, 8
        %s2024 = sadd.s32 %s2022, %s2023
        %s2025 = smul.addr %s2024, 4
        %s2026 = scalar_lea.vmem %s7, %s2025
      $region60: #{unet_up_block.1} parent=55 // pred_fallthru
        _
    $region56: #{unet_up_block.1} parent=5 // pred_fallthru
      _
  $region6: #{unet_up_block.1} parent=0 // loop_footer
    %s17 = sadd.s32 1, %s13
  $region7: #{unet_up_block.1} parent=0 // loop_footer_branch
    %12 = sbr.rel target = $region3
  $region8: #{unet_up_block.1} parent=0 // loop_exit
    _

</llo_original>
